<compile_context>
chip_gen: v7x
topology: tpu7x:2x2x1
jax: 0.10.0
libtpu: 0.0.40
codegen_flags: <defaults>
</compile_context>

<pallas_src>
import functools

import jax
import jax.numpy as jnp
import numpy as np
from jax import lax
from jax.experimental import pallas as pl
from jax.experimental.pallas import tpu as pltpu


def _self_attention_embed_kernel(
    x_ref,    # (BB, N, H)  f32 inputs block (BB batch elements)
    w_ref,    # (H, H)      Dense weight, (out, in) orientation (NOT transposed)
    p_ref,    # (4, H)      packed params: [dense_b + extra_b, query, gamma, beta]
    o_ref,    # (BB, H)     output block
):
    bb, n, hdim = x_ref.shape
    x = x_ref[...]                                   # (BB, N, H) f32

    p = p_ref[...]                                   # (4, H) f32
    bias = p[0:1, :]
    query = p[1:2, :]
    gamma = p[2:3, :]
    beta = p[3:4, :]

    # One fused MXU matmul for the whole batch tile.  y = x @ W^T expressed by
    # contracting the "in" dims of both operands (no transposed copy of W).
    # Operands may be bf16 (cast below); accumulation is f32.
    xf = x.reshape(bb * n, hdim).astype(w_ref.dtype)
    h = lax.dot_general(
        xf, w_ref[...],
        dimension_numbers=(((1,), (1,)), ((), ())),
        preferred_element_type=jnp.float32,
    )                                                # (BB*N, H) f32 accumulate
    h = jnp.tanh(h + bias)                           # elementwise stays f32

    # Attention over the chunk axis N.  All softmax tensors are 2-D (BB, N) so
    # exp (EUP) / max,sum (XLU) / mul (VPU) run on lane-dense vregs.
    logits = jnp.sum(h.reshape(bb, n, hdim) * query, axis=-1)       # (BB, N)
    m = jnp.max(logits, axis=-1, keepdims=True)                     # (BB, 1)
    e = jnp.exp(logits - m)
    denom = jnp.sum(e, axis=-1, keepdims=True)                      # (BB, 1)
    a = e * pl.reciprocal(denom, approx=False)                      # (BB, N)

    # Weighted sum over chunks (sublane reduce per tile): (BB, H)
    out = jnp.sum(x * a[:, :, None], axis=1)

    # TF-style LayerNorm over hidden dim (eps inside the sqrt), rsqrt on EUP.
    u = jnp.mean(out, axis=-1, keepdims=True)
    d = out - u
    s = jnp.mean(d * d, axis=-1, keepdims=True)
    y = d * lax.rsqrt(s + 1e-12)
    o_ref[...] = gamma * y + beta                    # dropout: identity (eval)


def _pick_block_b(B, N, H):
    """Heuristic batch tile: ~1 MiB x block, bb*N aligned to 256 (MXU width on
    v6e/v7x, and a multiple of 128 for v5e), bb a multiple of 8 so the (bb, H)
    output block tiles cleanly."""
    mult = max(8, -(-256 // N))                # bb*N multiple of 256 (when N | 256)
    mult = ((mult + 7) // 8) * 8               # and bb multiple of 8
    target = max(1, (1 << 20) // (N * H * 4))  # ~1 MiB f32 x block per grid step
    bb = max(1, min(target, B))
    bb = ((bb + mult - 1) // mult) * mult
    return bb


@functools.partial(jax.jit, static_argnames=("block_b", "matmul_dtype"))
def self_attention_embed(x, w, dense_b, extra_b, query, ln_w, ln_b,
                         *, block_b=None, matmul_dtype=jnp.bfloat16):
    """x: (B, N, H) float32.  w: (H, H) nn.Linear weight in (out, in) layout."""
    B, N, H = x.shape
    bb = int(block_b) if block_b is not None else _pick_block_b(B, N, H)
    b_pad = ((B + bb - 1) // bb) * bb
    x = x.astype(jnp.float32)
    if b_pad != B:
        # Padded rows produce finite values (LayerNorm of an all-zero row has
        # zero deviation, so rsqrt(eps) multiplies 0 -> beta) and are sliced
        # off below; softmax / LN are independent per row, so this is safe.
        x = jnp.pad(x, ((0, b_pad - B), (0, 0), (0, 0)))

    # Pack the four per-hidden vectors into one grid-invariant (4, H) input
    # (single DMA descriptor / pipeline buffer); Dense.bias and the extra bias
    # are folded into row 0.
    params = jnp.stack(
        [(dense_b + extra_b).astype(jnp.float32),
         query.astype(jnp.float32),
         ln_w.astype(jnp.float32),
         ln_b.astype(jnp.float32)], axis=0)                   # (4, H)
    w_mm = w.astype(matmul_dtype)      # bf16 MXU operands by default (all gens)

    out = pl.pallas_call(
        _self_attention_embed_kernel,
        out_shape=jax.ShapeDtypeStruct((b_pad, H), jnp.float32),
        grid=(b_pad // bb,),
        in_specs=[
            pl.BlockSpec((bb, N, H), lambda i: (i, 0, 0)),    # x (batch tile)
            pl.BlockSpec((H, H), lambda i: (0, 0)),           # W (out, in)
            pl.BlockSpec((4, H), lambda i: (0, 0)),           # packed params
        ],
        out_specs=pl.BlockSpec((bb, H), lambda i: (i, 0)),    # 2-D output
        compiler_params=pltpu.CompilerParams(
            dimension_semantics=("parallel",)),
    )(x, w_mm, params)
    return out[:B]                                            # (B, H)


def _reference(x, w, dense_b, extra_b, query, ln_w, ln_b, eps=1e-12):
    """Pure-JAX reference mirroring the PyTorch forward (eval mode)."""
    h = jnp.tanh(jnp.einsum("bnh,oh->bno", x, w) + dense_b + extra_b)
    logits = jnp.einsum("bnh,h->bn", h, query)
    a = jax.nn.softmax(logits, axis=1)        # F.softmax implicit dim=1 for 2-D
    out = jnp.sum(x * a[:, :, None], axis=1)
    u = jnp.mean(out, axis=-1, keepdims=True)
    s = jnp.mean((out - u) ** 2, axis=-1, keepdims=True)
    out = (out - u) / jnp.sqrt(s + eps)
    return ln_w * out + ln_b


if __name__ == "__main__":
    N, H = 8, 32      # max_chunk_number, hidden_size

    key = jax.random.PRNGKey(0)
    k_x, k_w, k_db, k_q, k_x2 = jax.random.split(key, 5)

    # Deterministic synthetic parameters (shapes per SelfAttentionEmbed.__init__)
    w = jax.random.normal(k_w, (H, H), dtype=jnp.float32) * 0.05        # Dense.weight (out, in)
    dense_b = jax.random.normal(k_db, (H,), dtype=jnp.float32) * 0.05   # Dense.bias
    extra_b = jnp.zeros((H,), dtype=jnp.float32)                        # self.bias (zeros init)
    query = jax.random.normal(k_q, (H,), dtype=jnp.float32)             # self.query (randn)
    ln_w = jnp.ones((H,), dtype=jnp.float32)                            # LayerNorm.weight
    ln_b = jnp.zeros((H,), dtype=jnp.float32)                           # LayerNorm.bias

    # --- Test 1: small batch (B=2), auto batch tile, f32 MXU, tight tol -----
    x = jax.random.normal(k_x, (2, N, H), dtype=jnp.float32)
    out = jax.block_until_ready(
        self_attention_embed(x, w, dense_b, extra_b, query, ln_w, ln_b,
                             matmul_dtype=jnp.float32))
    ref = _reference(x, w, dense_b, extra_b, query, ln_w, ln_b)
    np.testing.assert_allclose(np.asarray(out), np.asarray(ref),
                               rtol=1e-5, atol=1e-5)

    # --- Test 2: batch not a multiple of the tile (padding + multi-step grid),
    #             explicit small tile, f32 MXU ------------------------------
    x2 = jax.random.normal(k_x2, (20, N, H), dtype=jnp.float32)
    out2 = jax.block_until_ready(
        self_attention_embed(x2, w, dense_b, extra_b, query, ln_w, ln_b,
                             block_b=8, matmul_dtype=jnp.float32))
    ref2 = _reference(x2, w, dense_b, extra_b, query, ln_w, ln_b)
    np.testing.assert_allclose(np.asarray(out2), np.asarray(ref2),
                               rtol=1e-5, atol=1e-5)

    # --- Test 3: default path (auto tile + bf16 MXU operands), looser tol ---
    out3 = jax.block_until_ready(
        self_attention_embed(x2, w, dense_b, extra_b, query, ln_w, ln_b))
    np.testing.assert_allclose(np.asarray(out3), np.asarray(ref2),
                               rtol=5e-2, atol=5e-2)

    print("KERNEL_OK")
</pallas_src>

<mosaic_0001>
module attributes {stable_mosaic.version = 11 : i64} {
  func.func @_self_attention_embed_kernel(%arg0: i32, %arg1: memref<32x8x32xf32, #tpu.memory_space<vmem>>, %arg2: memref<32x32xf32, #tpu.memory_space<vmem>>, %arg3: memref<4x32xf32, #tpu.memory_space<vmem>>, %arg4: memref<32x32xf32, #tpu.memory_space<vmem>>) attributes {dimension_semantics = [#tpu.dimension_semantics<parallel>], iteration_bounds = array<i64: 1>, scalar_prefetch = 0 : i64, scratch_operands = 0 : i64, tpu.core_type = #tpu.core_type<tc>, window_params = [{transform_indices = @transform_0, window_bounds = array<i64: 32, 8, 32>}, {pipeline_mode = #tpu.pipeline_mode<synchronous>, transform_indices = @transform_1, window_bounds = array<i64: 32, 32>}, {pipeline_mode = #tpu.pipeline_mode<synchronous>, transform_indices = @transform_2, window_bounds = array<i64: 4, 32>}, {transform_indices = @transform_3, window_bounds = array<i64: 32, 32>}]} {
    %c0 = arith.constant 0 : index
    %c0_0 = arith.constant 0 : index
    %c0_1 = arith.constant 0 : index
    %0 = vector.load %arg1[%c0, %c0_0, %c0_1] : memref<32x8x32xf32, #tpu.memory_space<vmem>>, vector<32x8x32xf32>
    %c0_2 = arith.constant 0 : index
    %c0_3 = arith.constant 0 : index
    %1 = vector.load %arg3[%c0_2, %c0_3] : memref<4x32xf32, #tpu.memory_space<vmem>>, vector<4x32xf32>
    %2 = vector.extract_strided_slice %1 {offsets = [0, 0], sizes = [1, 32], strides = [1, 1]} : vector<4x32xf32> to vector<1x32xf32>
    %3 = vector.extract_strided_slice %1 {offsets = [1, 0], sizes = [1, 32], strides = [1, 1]} : vector<4x32xf32> to vector<1x32xf32>
    %4 = vector.extract_strided_slice %1 {offsets = [2, 0], sizes = [1, 32], strides = [1, 1]} : vector<4x32xf32> to vector<1x32xf32>
    %5 = vector.extract_strided_slice %1 {offsets = [3, 0], sizes = [1, 32], strides = [1, 1]} : vector<4x32xf32> to vector<1x32xf32>
    %6 = vector.shape_cast %0 : vector<32x8x32xf32> to vector<256x32xf32>
    %c0_4 = arith.constant 0 : index
    %c0_5 = arith.constant 0 : index
    %7 = vector.load %arg2[%c0_4, %c0_5] : memref<32x32xf32, #tpu.memory_space<vmem>>, vector<32x32xf32>
    %cst = arith.constant dense<0.000000e+00> : vector<256x32xf32>
    %8 = tpu.matmul %6, %7, %cst {dimension_numbers = #tpu.dot_dimension_numbers<[1], [1], [0], [0], [0, 0, 1, 0], [], []>} : vector<256x32xf32>, vector<32x32xf32>, vector<256x32xf32> -> vector<256x32xf32>
    %9 = vector.broadcast %2 : vector<1x32xf32> to vector<256x32xf32>
    %10 = arith.addf %8, %9 : vector<256x32xf32>
    %11 = math.tanh %10 : vector<256x32xf32>
    %12 = vector.shape_cast %11 : vector<256x32xf32> to vector<32x8x32xf32>
    %13 = vector.shape_cast %3 : vector<1x32xf32> to vector<1x1x32xf32>
    %14 = vector.broadcast %13 : vector<1x1x32xf32> to vector<32x8x32xf32>
    %15 = arith.mulf %12, %14 : vector<32x8x32xf32>
    %cst_6 = arith.constant dense<0.000000e+00> : vector<32x8xf32>
    %16 = vector.multi_reduction <add>, %15, %cst_6 [2] : vector<32x8x32xf32> to vector<32x8xf32>
    %cst_7 = arith.constant dense<0xFF800000> : vector<32xf32>
    %17 = vector.multi_reduction <maximumf>, %16, %cst_7 [1] : vector<32x8xf32> to vector<32xf32>
    %18 = vector.shape_cast %17 : vector<32xf32> to vector<32x1xf32>
    %19 = vector.broadcast %18 : vector<32x1xf32> to vector<32x8xf32>
    %20 = arith.subf %16, %19 : vector<32x8xf32>
    %21 = math.exp %20 : vector<32x8xf32>
    %cst_8 = arith.constant dense<0.000000e+00> : vector<32xf32>
    %22 = vector.multi_reduction <add>, %21, %cst_8 [1] : vector<32x8xf32> to vector<32xf32>
    %23 = vector.shape_cast %22 : vector<32xf32> to vector<32x1xf32>
    %24 = tpu.reciprocal %23 : vector<32x1xf32> -> vector<32x1xf32>
    %25 = vector.broadcast %24 : vector<32x1xf32> to vector<32x8xf32>
    %26 = arith.mulf %21, %25 : vector<32x8xf32>
    %27 = vector.shape_cast %26 : vector<32x8xf32> to vector<32x8x1xf32>
    %28 = vector.broadcast %27 : vector<32x8x1xf32> to vector<32x8x32xf32>
    %29 = arith.mulf %0, %28 : vector<32x8x32xf32>
    %cst_9 = arith.constant dense<0.000000e+00> : vector<32x32xf32>
    %30 = vector.multi_reduction <add>, %29, %cst_9 [1] : vector<32x8x32xf32> to vector<32x32xf32>
    %cst_10 = arith.constant dense<0.000000e+00> : vector<32xf32>
    %31 = vector.multi_reduction <add>, %30, %cst_10 [1] : vector<32x32xf32> to vector<32xf32>
    %32 = vector.shape_cast %31 : vector<32xf32> to vector<32x1xf32>
    %cst_11 = arith.constant 3.200000e+01 : f32
    %33 = vector.broadcast %cst_11 : f32 to vector<32x1xf32>
    %34 = arith.divf %32, %33 : vector<32x1xf32>
    %35 = vector.broadcast %34 : vector<32x1xf32> to vector<32x32xf32>
    %36 = arith.subf %30, %35 : vector<32x32xf32>
    %37 = arith.mulf %36, %36 : vector<32x32xf32>
    %cst_12 = arith.constant dense<0.000000e+00> : vector<32xf32>
    %38 = vector.multi_reduction <add>, %37, %cst_12 [1] : vector<32x32xf32> to vector<32xf32>
    %39 = vector.shape_cast %38 : vector<32xf32> to vector<32x1xf32>
    %cst_13 = arith.constant 3.200000e+01 : f32
    %40 = vector.broadcast %cst_13 : f32 to vector<32x1xf32>
    %41 = arith.divf %39, %40 : vector<32x1xf32>
    %cst_14 = arith.constant 9.99999996E-13 : f32
    %42 = vector.broadcast %cst_14 : f32 to vector<32x1xf32>
    %43 = arith.addf %41, %42 : vector<32x1xf32>
    %44 = math.rsqrt %43 : vector<32x1xf32>
    %45 = vector.broadcast %44 : vector<32x1xf32> to vector<32x32xf32>
    %46 = arith.mulf %36, %45 : vector<32x32xf32>
    %47 = vector.broadcast %4 : vector<1x32xf32> to vector<32x32xf32>
    %48 = arith.mulf %47, %46 : vector<32x32xf32>
    %49 = vector.broadcast %5 : vector<1x32xf32> to vector<32x32xf32>
    %50 = arith.addf %48, %49 : vector<32x32xf32>
    %c0_15 = arith.constant 0 : index
    %c0_16 = arith.constant 0 : index
    %51 = vector.load %arg4[%c0_15, %c0_16] : memref<32x32xf32, #tpu.memory_space<vmem>>, vector<32x32xf32>
    tpu.vector_store %arg4[%c0_15, %c0_16], %50 {strides = array<i32>} : memref<32x32xf32, #tpu.memory_space<vmem>>, vector<32x32xf32>,
    return
  }
  func.func @transform_0(%arg0: i32) -> (i32, i32, i32) {
    %c0_i32 = arith.constant 0 : i32
    %c0_i32_0 = arith.constant 0 : i32
    %c0_i32_1 = arith.constant 0 : i32
    return %arg0, %c0_i32, %c0_i32_0 : i32, i32, i32
  }
  func.func @transform_1(%arg0: i32) -> (i32, i32) {
    %c0_i32 = arith.constant 0 : i32
    %c0_i32_0 = arith.constant 0 : i32
    %c0_i32_1 = arith.constant 0 : i32
    return %c0_i32, %c0_i32_0 : i32, i32
  }
  func.func @transform_2(%arg0: i32) -> (i32, i32) {
    %c0_i32 = arith.constant 0 : i32
    %c0_i32_0 = arith.constant 0 : i32
    %c0_i32_1 = arith.constant 0 : i32
    return %c0_i32, %c0_i32_0 : i32, i32
  }
  func.func @transform_3(%arg0: i32) -> (i32, i32) {
    %c0_i32 = arith.constant 0 : i32
    %c0_i32_0 = arith.constant 0 : i32
    return %arg0, %c0_i32 : i32, i32
  }
}

</mosaic_0001>

<llo_original>
// kernel: self_attention_embed.1
$region0: #{self_attention_embed.1}
  #allocation0 [shape = 'u32[]', space=smem, size = 0x4, offset = 0x4, fixed_abs, tag = 'smem constant byte address 0x4 - core index']
  #allocation1 [shape = 'u32[144,128]{1,0:T(1,128)}', space=vmem, size = 0x12000, scoped, tag = 'internal scratch']
  %s0 = inlined_call_operand.vmem [shape: f32[32,8,32], index: 0, kind: input, shape index: {}]
  %s1 = inlined_call_operand.vmem [shape: f32[32,32], index: 1, kind: input, shape index: {}]
  %s2 = inlined_call_operand.vmem [shape: f32[4,32], index: 2, kind: input, shape index: {}]
  %s3 = inlined_call_operand.vmem [shape: f32[32,32], index: 3, kind: output, shape index: {}]
  %s4 = sld [smem:[#allocation0]]
  $region22: #{self_attention_embed.1} parent=0
    _
  %s6 = ssub.s32 1, %s4
  %s7 = scalar_select 0, %s6, %s4
  // Predicated region
  $region2: #{self_attention_embed.1} parent=0 // pred_check
    _
  $region3: #{self_attention_embed.1} parent=0 // pred_check_branch
    %9 = sbr.rel (0) target = $region5
  $region4: #{self_attention_embed.1} parent=0 // pred_region
    _
  $region5: #{self_attention_embed.1} parent=0 // pred_fallthru
    _
  // Predicated region
  $region6: #{self_attention_embed.1} parent=0 // pred_check
    _
  $region7: #{self_attention_embed.1} parent=0 // pred_check_branch
    %11 = sbr.rel (0) target = $region9
  $region8: #{self_attention_embed.1} parent=0 // pred_region
    _
  $region9: #{self_attention_embed.1} parent=0 // pred_fallthru
    _
  // Predicated region
  $region10: #{self_attention_embed.1} parent=0 // pred_check
    _
  $region11: #{self_attention_embed.1} parent=0 // pred_check_branch
    %13 = sbr.rel (0) target = $region13
  $region12: #{self_attention_embed.1} parent=0 // pred_region
    _
  $region13: #{self_attention_embed.1} parent=0 // pred_fallthru
    _
  %v14 = vld [vmem:[%s0] sm:$0xff]
  %v15 = vld [vmem:[%s0 + $0x8] sm:$0xff]
  %v16 = vld [vmem:[%s0 + $0x10] sm:$0xff]
  %v17 = vld [vmem:[%s0 + $0x18] sm:$0xff]
  %v18 = vld [vmem:[%s0 + $0x20] sm:$0xff]
  %v19 = vld [vmem:[%s0 + $0x28] sm:$0xff]
  %v20 = vld [vmem:[%s0 + $0x30] sm:$0xff]
  %v21 = vld [vmem:[%s0 + $0x38] sm:$0xff]
  %v22 = vld [vmem:[%s0 + $0x40] sm:$0xff]
  %v23 = vld [vmem:[%s0 + $0x48] sm:$0xff]
  %v24 = vld [vmem:[%s0 + $0x50] sm:$0xff]
  %v25 = vld [vmem:[%s0 + $0x58] sm:$0xff]
  %v26 = vld [vmem:[%s0 + $0x60] sm:$0xff]
  %v27 = vld [vmem:[%s0 + $0x68] sm:$0xff]
  %v28 = vld [vmem:[%s0 + $0x70] sm:$0xff]
  %v29 = vld [vmem:[%s0 + $0x78] sm:$0xff]
  %v30 = vld [vmem:[%s0 + $0x80] sm:$0xff]
  %v31 = vld [vmem:[%s0 + $0x88] sm:$0xff]
  %v32 = vld [vmem:[%s0 + $0x90] sm:$0xff]
  %v33 = vld [vmem:[%s0 + $0x98] sm:$0xff]
  %v34 = vld [vmem:[%s0 + $0xa0] sm:$0xff]
  %v35 = vld [vmem:[%s0 + $0xa8] sm:$0xff]
  %v36 = vld [vmem:[%s0 + $0xb0] sm:$0xff]
  %v37 = vld [vmem:[%s0 + $0xb8] sm:$0xff]
  %v38 = vld [vmem:[%s0 + $0xc0] sm:$0xff]
  %v39 = vld [vmem:[%s0 + $0xc8] sm:$0xff]
  %v40 = vld [vmem:[%s0 + $0xd0] sm:$0xff]
  %v41 = vld [vmem:[%s0 + $0xd8] sm:$0xff]
  %v42 = vld [vmem:[%s0 + $0xe0] sm:$0xff]
  %v43 = vld [vmem:[%s0 + $0xe8] sm:$0xff]
  %v44 = vld [vmem:[%s0 + $0xf0] sm:$0xff]
  %v45 = vld [vmem:[%s0 + $0xf8] sm:$0xff]
  %v46 = vld [vmem:[%s2] sm:$0xf]
  %v47 = vld [vmem:[%s1] sm:$0xff]
  %v48 = vld [vmem:[%s1 + $0x8] sm:$0xff]
  %v49 = vld [vmem:[%s1 + $0x10] sm:$0xff]
  %v50 = vld [vmem:[%s1 + $0x18] sm:$0xff]
  %v51 = vlaneseq
  %v52 = vshrl.u32 %v51, 7
  %v53 = vsub.s32 0, %v52
  %v54 = vrot.slane %v46, %v53
  %vm55 = vcmask 261120
  %v57 = vsel %vm55, %v14, 0
  %v60 = vsel %vm55, %v15, 0
  %v63 = vsel %vm55, %v16, 0
  %v66 = vsel %vm55, %v17, 0
  %v69 = vsel %vm55, %v18, 0
  %v72 = vsel %vm55, %v19, 0
  %v75 = vsel %vm55, %v20, 0
  %v78 = vsel %vm55, %v21, 0
  %v81 = vsel %vm55, %v22, 0
  %v84 = vsel %vm55, %v23, 0
  %v87 = vsel %vm55, %v24, 0
  %v90 = vsel %vm55, %v25, 0
  %v93 = vsel %vm55, %v26, 0
  %v96 = vsel %vm55, %v27, 0
  %v99 = vsel %vm55, %v28, 0
  %v102 = vsel %vm55, %v29, 0
  %v105 = vsel %vm55, %v30, 0
  %v108 = vsel %vm55, %v31, 0
  %v111 = vsel %vm55, %v32, 0
  %v114 = vsel %vm55, %v33, 0
  %v117 = vsel %vm55, %v34, 0
  %v120 = vsel %vm55, %v35, 0
  %v123 = vsel %vm55, %v36, 0
  %v126 = vsel %vm55, %v37, 0
  %v129 = vsel %vm55, %v38, 0
  %v132 = vsel %vm55, %v39, 0
  %v135 = vsel %vm55, %v40, 0
  %v138 = vsel %vm55, %v41, 0
  %v141 = vsel %vm55, %v42, 0
  %v144 = vsel %vm55, %v43, 0
  %v147 = vsel %vm55, %v44, 0
  %v150 = vsel %vm55, %v45, 0
  %v153 = vsel %vm55, %v47, 0
  %v156 = vsel %vm55, %v48, 0
  %v159 = vsel %vm55, %v49, 0
  %v162 = vsel %vm55, %v50, 0
  %164 = vmatprep.subr.mxu0 0.0
  %165 = vmatpush1.xpose.msra.mxu0 %v153
  %166 = vmatprep.subr.mxu0 0.0
  %167 = vmatpush1.xpose.msra.mxu0 %v156
  %168 = vmatprep.subr.mxu0 0.0
  %169 = vmatpush1.xpose.msra.mxu0 %v159
  %170 = vmatprep.subr.mxu0 0.0
  %171 = vmatpush1.xpose.msra.mxu0 %v162
  %172 = vmatprep.subr.mxu0 0.0
  %173 = vmatpush1.xpose.msra.mxu0 0.0
  %174 = vmatprep.subr.mxu0 0.0
  %175 = vmatpush1.xpose.msra.mxu0 0.0
  %176 = vmatprep.subr.mxu0 0.0
  %177 = vmatpush1.xpose.msra.mxu0 0.0
  %178 = vmatprep.subr.mxu0 0.0
  %179 = vmatpush1.xpose.msra.mxu0 0.0
  %180 = vmatprep.subr.mxu0 0.0
  %181 = vmatpush1.xpose.msra.mxu0 0.0
  %182 = vmatprep.subr.mxu0 0.0
  %183 = vmatpush1.xpose.msra.mxu0 0.0
  %184 = vmatprep.subr.mxu0 0.0
  %185 = vmatpush1.xpose.msra.mxu0 0.0
  %186 = vmatprep.subr.mxu0 0.0
  %187 = vmatpush1.xpose.msra.mxu0 0.0
  %188 = vmatprep.subr.mxu0 0.0
  %189 = vmatpush1.xpose.msra.mxu0 0.0
  %190 = vmatprep.subr.mxu0 0.0
  %191 = vmatpush1.xpose.msra.mxu0 0.0
  %192 = vmatprep.subr.mxu0 0.0
  %193 = vmatpush1.xpose.msra.mxu0 0.0
  %194 = vmatprep.subr.mxu0 0.0
  %195 = vmatpush1.xpose.msra.mxu0 0.0
  %196 = vmatprep.subr.mxu0 0.0
  %197 = vmatpush1.xpose.msra.mxu0 0.0
  %198 = vmatprep.subr.mxu0 0.0
  %199 = vmatpush1.xpose.msra.mxu0 0.0
  %200 = vmatprep.subr.mxu0 0.0
  %201 = vmatpush1.xpose.msra.mxu0 0.0
  %202 = vmatprep.subr.mxu0 0.0
  %203 = vmatpush1.xpose.msra.mxu0 0.0
  %204 = vmatprep.subr.mxu0 0.0
  %205 = vmatpush1.xpose.msra.mxu0 0.0
  %206 = vmatprep.subr.mxu0 0.0
  %207 = vmatpush1.xpose.msra.mxu0 0.0
  %208 = vmatprep.subr.mxu0 0.0
  %209 = vmatpush1.xpose.msra.mxu0 0.0
  %210 = vmatprep.subr.mxu0 0.0
  %211 = vmatpush1.xpose.msra.mxu0 0.0
  %212 = vmatprep.subr.mxu0 0.0
  %213 = vmatpush1.xpose.msra.mxu0 0.0
  %214 = vmatprep.subr.mxu0 0.0
  %215 = vmatpush1.xpose.msra.mxu0 0.0
  %216 = vmatprep.subr.mxu0 0.0
  %217 = vmatpush1.xpose.msra.mxu0 0.0
  %218 = vmatprep.subr.mxu0 0.0
  %219 = vmatpush1.xpose.msra.mxu0 0.0
  %220 = vmatprep.subr.mxu0 0.0
  %221 = vmatpush1.xpose.msra.mxu0 0.0
  %222 = vmatprep.subr.mxu0 0.0
  %223 = vmatpush1.xpose.msra.mxu0 0.0
  %224 = vmatprep.subr.mxu0 0.0
  %225 = vmatpush1.xpose.msra.mxu0 0.0
  %226 = vmatprep.subr.mxu0 0.0
  %227 = vmatpush1.xpose.msra.mxu0 0.0
  %228 = vmatprep.mubr.f32.mxu0 0.0
  %229 = vmatmul.mubr.f32.gmra.mrb[0].mxu0 %v57
  %v230 = vpop.f32.mrb[0].mxu0
  %v231 = vadd.f32 %v54, %v230
  %v232 = vpop.f32.mrb[0].mxu0
  %233 = vmatprep.mubr.f32.mxu0 0.0
  %234 = vmatmul.mubr.f32.gmra.mrb[0].mxu0 %v60
  %v235 = vpop.f32.mrb[0].mxu0
  %v236 = vadd.f32 %v54, %v235
  %v237 = vpop.f32.mrb[0].mxu0
  %238 = vmatprep.mubr.f32.mxu0 0.0
  %239 = vmatmul.mubr.f32.gmra.mrb[0].mxu0 %v63
  %v240 = vpop.f32.mrb[0].mxu0
  %v241 = vadd.f32 %v54, %v240
  %v242 = vpop.f32.mrb[0].mxu0
  %243 = vmatprep.mubr.f32.mxu0 0.0
  %244 = vmatmul.mubr.f32.gmra.mrb[0].mxu0 %v66
  %v245 = vpop.f32.mrb[0].mxu0
  %v246 = vadd.f32 %v54, %v245
  %v247 = vpop.f32.mrb[0].mxu0
  %248 = vmatprep.mubr.f32.mxu0 0.0
  %249 = vmatmul.mubr.f32.gmra.mrb[0].mxu0 %v69
  %v250 = vpop.f32.mrb[0].mxu0
  %v251 = vadd.f32 %v54, %v250
  %v252 = vpop.f32.mrb[0].mxu0
  %253 = vmatprep.mubr.f32.mxu0 0.0
  %254 = vmatmul.mubr.f32.gmra.mrb[0].mxu0 %v72
  %v255 = vpop.f32.mrb[0].mxu0
  %v256 = vadd.f32 %v54, %v255
  %v257 = vpop.f32.mrb[0].mxu0
  %258 = vmatprep.mubr.f32.mxu0 0.0
  %259 = vmatmul.mubr.f32.gmra.mrb[0].mxu0 %v75
  %v260 = vpop.f32.mrb[0].mxu0
  %v261 = vadd.f32 %v54, %v260
  %v262 = vpop.f32.mrb[0].mxu0
  %263 = vmatprep.mubr.f32.mxu0 0.0
  %264 = vmatmul.mubr.f32.gmra.mrb[0].mxu0 %v78
  %v265 = vpop.f32.mrb[0].mxu0
  %v266 = vadd.f32 %v54, %v265
  %v267 = vpop.f32.mrb[0].mxu0
  %268 = vmatprep.mubr.f32.mxu0 0.0
  %269 = vmatmul.mubr.f32.gmra.mrb[0].mxu0 %v81
  %v270 = vpop.f32.mrb[0].mxu0
  %v271 = vadd.f32 %v54, %v270
  %v272 = vpop.f32.mrb[0].mxu0
  %273 = vmatprep.mubr.f32.mxu0 0.0
  %274 = vmatmul.mubr.f32.gmra.mrb[0].mxu0 %v84
  %v275 = vpop.f32.mrb[0].mxu0
  %v276 = vadd.f32 %v54, %v275
  %v277 = vpop.f32.mrb[0].mxu0
  %278 = vmatprep.mubr.f32.mxu0 0.0
  %279 = vmatmul.mubr.f32.gmra.mrb[0].mxu0 %v87
  %v280 = vpop.f32.mrb[0].mxu0
  %v281 = vadd.f32 %v54, %v280
  %v282 = vpop.f32.mrb[0].mxu0
  %283 = vmatprep.mubr.f32.mxu0 0.0
  %284 = vmatmul.mubr.f32.gmra.mrb[0].mxu0 %v90
  %v285 = vpop.f32.mrb[0].mxu0
  %v286 = vadd.f32 %v54, %v285
  %v287 = vpop.f32.mrb[0].mxu0
  %288 = vmatprep.mubr.f32.mxu0 0.0
  %289 = vmatmul.mubr.f32.gmra.mrb[0].mxu0 %v93
  %v290 = vpop.f32.mrb[0].mxu0
  %v291 = vadd.f32 %v54, %v290
  %v292 = vpop.f32.mrb[0].mxu0
  %293 = vmatprep.mubr.f32.mxu0 0.0
  %294 = vmatmul.mubr.f32.gmra.mrb[0].mxu0 %v96
  %v295 = vpop.f32.mrb[0].mxu0
  %v296 = vadd.f32 %v54, %v295
  %v297 = vpop.f32.mrb[0].mxu0
  %298 = vmatprep.mubr.f32.mxu0 0.0
  %299 = vmatmul.mubr.f32.gmra.mrb[0].mxu0 %v99
  %v300 = vpop.f32.mrb[0].mxu0
  %v301 = vadd.f32 %v54, %v300
  %v302 = vpop.f32.mrb[0].mxu0
  %303 = vmatprep.mubr.f32.mxu0 0.0
  %304 = vmatmul.mubr.f32.gmra.mrb[0].mxu0 %v102
  %v305 = vpop.f32.mrb[0].mxu0
  %v306 = vadd.f32 %v54, %v305
  %v307 = vpop.f32.mrb[0].mxu0
  %308 = vmatprep.mubr.f32.mxu0 0.0
  %309 = vmatmul.mubr.f32.gmra.mrb[0].mxu0 %v105
  %v310 = vpop.f32.mrb[0].mxu0
  %v311 = vadd.f32 %v54, %v310
  %v312 = vpop.f32.mrb[0].mxu0
  %313 = vmatprep.mubr.f32.mxu0 0.0
  %314 = vmatmul.mubr.f32.gmra.mrb[0].mxu0 %v108
  %v315 = vpop.f32.mrb[0].mxu0
  %v316 = vadd.f32 %v54, %v315
  %v317 = vpop.f32.mrb[0].mxu0
  %318 = vmatprep.mubr.f32.mxu0 0.0
  %319 = vmatmul.mubr.f32.gmra.mrb[0].mxu0 %v111
  %v320 = vpop.f32.mrb[0].mxu0
  %v321 = vadd.f32 %v54, %v320
  %v322 = vpop.f32.mrb[0].mxu0
  %323 = vmatprep.mubr.f32.mxu0 0.0
  %324 = vmatmul.mubr.f32.gmra.mrb[0].mxu0 %v114
  %v325 = vpop.f32.mrb[0].mxu0
  %v326 = vadd.f32 %v54, %v325
  %v327 = vpop.f32.mrb[0].mxu0
  %328 = vmatprep.mubr.f32.mxu0 0.0
  %329 = vmatmul.mubr.f32.gmra.mrb[0].mxu0 %v117
  %v330 = vpop.f32.mrb[0].mxu0
  %v331 = vadd.f32 %v54, %v330
  %v332 = vpop.f32.mrb[0].mxu0
  %333 = vmatprep.mubr.f32.mxu0 0.0
  %334 = vmatmul.mubr.f32.gmra.mrb[0].mxu0 %v120
  %v335 = vpop.f32.mrb[0].mxu0
  %v336 = vadd.f32 %v54, %v335
  %v337 = vpop.f32.mrb[0].mxu0
  %338 = vmatprep.mubr.f32.mxu0 0.0
  %339 = vmatmul.mubr.f32.gmra.mrb[0].mxu0 %v123
  %v340 = vpop.f32.mrb[0].mxu0
  %v341 = vadd.f32 %v54, %v340
  %v342 = vpop.f32.mrb[0].mxu0
  %343 = vmatprep.mubr.f32.mxu0 0.0
  %344 = vmatmul.mubr.f32.gmra.mrb[0].mxu0 %v126
  %v345 = vpop.f32.mrb[0].mxu0
  %v346 = vadd.f32 %v54, %v345
  %v347 = vpop.f32.mrb[0].mxu0
  %348 = vmatprep.mubr.f32.mxu0 0.0
  %349 = vmatmul.mubr.f32.gmra.mrb[0].mxu0 %v129
  %v350 = vpop.f32.mrb[0].mxu0
  %v351 = vadd.f32 %v54, %v350
  %v352 = vpop.f32.mrb[0].mxu0
  %353 = vmatprep.mubr.f32.mxu0 0.0
  %354 = vmatmul.mubr.f32.gmra.mrb[0].mxu0 %v132
  %v355 = vpop.f32.mrb[0].mxu0
  %v356 = vadd.f32 %v54, %v355
  %v357 = vpop.f32.mrb[0].mxu0
  %358 = vmatprep.mubr.f32.mxu0 0.0
  %359 = vmatmul.mubr.f32.gmra.mrb[0].mxu0 %v135
  %v360 = vpop.f32.mrb[0].mxu0
  %v361 = vadd.f32 %v54, %v360
  %v362 = vpop.f32.mrb[0].mxu0
  %363 = vmatprep.mubr.f32.mxu0 0.0
  %364 = vmatmul.mubr.f32.gmra.mrb[0].mxu0 %v138
  %v365 = vpop.f32.mrb[0].mxu0
  %v366 = vadd.f32 %v54, %v365
  %v367 = vpop.f32.mrb[0].mxu0
  %368 = vmatprep.mubr.f32.mxu0 0.0
  %369 = vmatmul.mubr.f32.gmra.mrb[0].mxu0 %v141
  %v370 = vpop.f32.mrb[0].mxu0
  %v371 = vadd.f32 %v54, %v370
  %v372 = vpop.f32.mrb[0].mxu0
  %373 = vmatprep.mubr.f32.mxu0 0.0
  %374 = vmatmul.mubr.f32.gmra.mrb[0].mxu0 %v144
  %v375 = vpop.f32.mrb[0].mxu0
  %v376 = vadd.f32 %v54, %v375
  %v377 = vpop.f32.mrb[0].mxu0
  %378 = vmatprep.mubr.f32.mxu0 0.0
  %379 = vmatmul.mubr.f32.gmra.mrb[0].mxu0 %v147
  %v380 = vpop.f32.mrb[0].mxu0
  %v381 = vadd.f32 %v54, %v380
  %v382 = vpop.f32.mrb[0].mxu0
  %383 = vmatprep.mubr.f32.mxu0 0.0
  %384 = vmatmul.mubr.f32.gmra.mrb[0].mxu0 %v150
  %v385 = vpop.f32.mrb[0].mxu0
  %v386 = vadd.f32 %v54, %v385
  %v387 = vpop.f32.mrb[0].mxu0
  %388 = vdwg.mxu0
  %v389 = vtanh.pop %v231
  %v390 = vtanh.pop %v236
  %v391 = vtanh.pop %v241
  %v392 = vtanh.pop %v246
  %v393 = vtanh.pop %v251
  %v394 = vtanh.pop %v256
  %v395 = vtanh.pop %v261
  %v396 = vtanh.pop %v266
  %v397 = vtanh.pop %v271
  %v398 = vtanh.pop %v276
  %v399 = vtanh.pop %v281
  %v400 = vtanh.pop %v286
  %v401 = vtanh.pop %v291
  %v402 = vtanh.pop %v296
  %v403 = vtanh.pop %v301
  %v404 = vtanh.pop %v306
  %v405 = vtanh.pop %v311
  %v406 = vtanh.pop %v316
  %v407 = vtanh.pop %v321
  %v408 = vtanh.pop %v326
  %v409 = vtanh.pop %v331
  %v410 = vtanh.pop %v336
  %v411 = vtanh.pop %v341
  %v412 = vtanh.pop %v346
  %v413 = vtanh.pop %v351
  %v414 = vtanh.pop %v356
  %v415 = vtanh.pop %v361
  %v416 = vtanh.pop %v366
  %v417 = vtanh.pop %v371
  %v418 = vtanh.pop %v376
  %v419 = vtanh.pop %v381
  %v420 = vtanh.pop %v386
  %v421 = vlaneseq
  %v422 = vshrl.u32 %v421, 7
  %v423 = vsub.s32 1, %v422
  %v424 = vrot.slane %v46, %v423
  %v425 = vmul.f32 %v389, %v424
  %v426 = vmul.f32 %v390, %v424
  %v427 = vmul.f32 %v391, %v424
  %v428 = vmul.f32 %v392, %v424
  %v429 = vmul.f32 %v393, %v424
  %v430 = vmul.f32 %v394, %v424
  %v431 = vmul.f32 %v395, %v424
  %v432 = vmul.f32 %v396, %v424
  %v433 = vmul.f32 %v397, %v424
  %v434 = vmul.f32 %v398, %v424
  %v435 = vmul.f32 %v399, %v424
  %v436 = vmul.f32 %v400, %v424
  %v437 = vmul.f32 %v401, %v424
  %v438 = vmul.f32 %v402, %v424
  %v439 = vmul.f32 %v403, %v424
  %v440 = vmul.f32 %v404, %v424
  %v441 = vmul.f32 %v405, %v424
  %v442 = vmul.f32 %v406, %v424
  %v443 = vmul.f32 %v407, %v424
  %v444 = vmul.f32 %v408, %v424
  %v445 = vmul.f32 %v409, %v424
  %v446 = vmul.f32 %v410, %v424
  %v447 = vmul.f32 %v411, %v424
  %v448 = vmul.f32 %v412, %v424
  %v449 = vmul.f32 %v413, %v424
  %v450 = vmul.f32 %v414, %v424
  %v451 = vmul.f32 %v415, %v424
  %v452 = vmul.f32 %v416, %v424
  %v453 = vmul.f32 %v417, %v424
  %v454 = vmul.f32 %v418, %v424
  %v455 = vmul.f32 %v419, %v424
  %v456 = vmul.f32 %v420, %v424
  %v457 = vsel %vm55, %v425, 0.0
  %458 = vadd.xlane.f32.xlu0 %v457
  %v459 = vpop.xlane.xlu0 %458
  %v460 = vsel %vm55, %v426, 0.0
  %461 = vadd.xlane.f32.xlu0 %v460
  %v462 = vpop.xlane.xlu0 %461
  %v463 = vsel %vm55, %v427, 0.0
  %464 = vadd.xlane.f32.xlu0 %v463
  %v465 = vpop.xlane.xlu0 %464
  %v466 = vsel %vm55, %v428, 0.0
  %467 = vadd.xlane.f32.xlu0 %v466
  %v468 = vpop.xlane.xlu0 %467
  %v469 = vsel %vm55, %v429, 0.0
  %470 = vadd.xlane.f32.xlu0 %v469
  %v471 = vpop.xlane.xlu0 %470
  %v472 = vsel %vm55, %v430, 0.0
  %473 = vadd.xlane.f32.xlu0 %v472
  %v474 = vpop.xlane.xlu0 %473
  %v475 = vsel %vm55, %v431, 0.0
  %476 = vadd.xlane.f32.xlu0 %v475
  %v477 = vpop.xlane.xlu0 %476
  %v478 = vsel %vm55, %v432, 0.0
  %479 = vadd.xlane.f32.xlu0 %v478
  %v480 = vpop.xlane.xlu0 %479
  %v481 = vsel %vm55, %v433, 0.0
  %482 = vadd.xlane.f32.xlu0 %v481
  %v483 = vpop.xlane.xlu0 %482
  %v484 = vsel %vm55, %v434, 0.0
  %485 = vadd.xlane.f32.xlu0 %v484
  %v486 = vpop.xlane.xlu0 %485
  %v487 = vsel %vm55, %v435, 0.0
  %488 = vadd.xlane.f32.xlu0 %v487
  %v489 = vpop.xlane.xlu0 %488
  %v490 = vsel %vm55, %v436, 0.0
  %491 = vadd.xlane.f32.xlu0 %v490
  %v492 = vpop.xlane.xlu0 %491
  %v493 = vsel %vm55, %v437, 0.0
  %494 = vadd.xlane.f32.xlu0 %v493
  %v495 = vpop.xlane.xlu0 %494
  %v496 = vsel %vm55, %v438, 0.0
  %497 = vadd.xlane.f32.xlu0 %v496
  %v498 = vpop.xlane.xlu0 %497
  %v499 = vsel %vm55, %v439, 0.0
  %500 = vadd.xlane.f32.xlu0 %v499
  %v501 = vpop.xlane.xlu0 %500
  %v502 = vsel %vm55, %v440, 0.0
  %503 = vadd.xlane.f32.xlu0 %v502
  %v504 = vpop.xlane.xlu0 %503
  %v505 = vsel %vm55, %v441, 0.0
  %506 = vadd.xlane.f32.xlu0 %v505
  %v507 = vpop.xlane.xlu0 %506
  %v508 = vsel %vm55, %v442, 0.0
  %509 = vadd.xlane.f32.xlu0 %v508
  %v510 = vpop.xlane.xlu0 %509
  %v511 = vsel %vm55, %v443, 0.0
  %512 = vadd.xlane.f32.xlu0 %v511
  %v513 = vpop.xlane.xlu0 %512
  %v514 = vsel %vm55, %v444, 0.0
  %515 = vadd.xlane.f32.xlu0 %v514
  %v516 = vpop.xlane.xlu0 %515
  %v517 = vsel %vm55, %v445, 0.0
  %518 = vadd.xlane.f32.xlu0 %v517
  %v519 = vpop.xlane.xlu0 %518
  %v520 = vsel %vm55, %v446, 0.0
  %521 = vadd.xlane.f32.xlu0 %v520
  %v522 = vpop.xlane.xlu0 %521
  %v523 = vsel %vm55, %v447, 0.0
  %524 = vadd.xlane.f32.xlu0 %v523
  %v525 = vpop.xlane.xlu0 %524
  %v526 = vsel %vm55, %v448, 0.0
  %527 = vadd.xlane.f32.xlu0 %v526
  %v528 = vpop.xlane.xlu0 %527
  %v529 = vsel %vm55, %v449, 0.0
  %530 = vadd.xlane.f32.xlu0 %v529
  %v531 = vpop.xlane.xlu0 %530
  %v532 = vsel %vm55, %v450, 0.0
  %533 = vadd.xlane.f32.xlu0 %v532
  %v534 = vpop.xlane.xlu0 %533
  %v535 = vsel %vm55, %v451, 0.0
  %536 = vadd.xlane.f32.xlu0 %v535
  %v537 = vpop.xlane.xlu0 %536
  %v538 = vsel %vm55, %v452, 0.0
  %539 = vadd.xlane.f32.xlu0 %v538
  %v540 = vpop.xlane.xlu0 %539
  %v541 = vsel %vm55, %v453, 0.0
  %542 = vadd.xlane.f32.xlu0 %v541
  %v543 = vpop.xlane.xlu0 %542
  %v544 = vsel %vm55, %v454, 0.0
  %545 = vadd.xlane.f32.xlu0 %v544
  %v546 = vpop.xlane.xlu0 %545
  %v547 = vsel %vm55, %v455, 0.0
  %548 = vadd.xlane.f32.xlu0 %v547
  %v549 = vpop.xlane.xlu0 %548
  %v550 = vsel %vm55, %v456, 0.0
  %551 = vadd.xlane.f32.xlu0 %v550
  %v552 = vpop.xlane.xlu0 %551
  %v585 = vlaneseq
  %v586 = vand.u32 %v585, 127
  %v587 = vlaneseq
  %v588 = vshrl.u32 %v587, 7
  %v589 = vsub.s32 %v586, %v588
  %v590 = vrot.slane %v459, %v589
  %v591 = vlaneseq
  %v592 = vshrl.u32 %v591, 7
  %v593 = vsub.s32 %v586, %v592
  %v594 = vrot.slane %v462, %v593
  %v595 = vlaneseq
  %v596 = vshrl.u32 %v595, 7
  %v597 = vsub.s32 %v586, %v596
  %v598 = vrot.slane %v465, %v597
  %v599 = vlaneseq
  %v600 = vshrl.u32 %v599, 7
  %v601 = vsub.s32 %v586, %v600
  %v602 = vrot.slane %v468, %v601
  %v603 = vlaneseq
  %v604 = vshrl.u32 %v603, 7
  %v605 = vsub.s32 %v586, %v604
  %v606 = vrot.slane %v471, %v605
  %v607 = vlaneseq
  %v608 = vshrl.u32 %v607, 7
  %v609 = vsub.s32 %v586, %v608
  %v610 = vrot.slane %v474, %v609
  %v611 = vlaneseq
  %v612 = vshrl.u32 %v611, 7
  %v613 = vsub.s32 %v586, %v612
  %v614 = vrot.slane %v477, %v613
  %v615 = vlaneseq
  %v616 = vshrl.u32 %v615, 7
  %v617 = vsub.s32 %v586, %v616
  %v618 = vrot.slane %v480, %v617
  %v619 = vlaneseq
  %v620 = vshrl.u32 %v619, 7
  %v621 = vsub.s32 %v586, %v620
  %v622 = vrot.slane %v483, %v621
  %v623 = vlaneseq
  %v624 = vshrl.u32 %v623, 7
  %v625 = vsub.s32 %v586, %v624
  %v626 = vrot.slane %v486, %v625
  %v627 = vlaneseq
  %v628 = vshrl.u32 %v627, 7
  %v629 = vsub.s32 %v586, %v628
  %v630 = vrot.slane %v489, %v629
  %v631 = vlaneseq
  %v632 = vshrl.u32 %v631, 7
  %v633 = vsub.s32 %v586, %v632
  %v634 = vrot.slane %v492, %v633
  %v635 = vlaneseq
  %v636 = vshrl.u32 %v635, 7
  %v637 = vsub.s32 %v586, %v636
  %v638 = vrot.slane %v495, %v637
  %v639 = vlaneseq
  %v640 = vshrl.u32 %v639, 7
  %v641 = vsub.s32 %v586, %v640
  %v642 = vrot.slane %v498, %v641
  %v643 = vlaneseq
  %v644 = vshrl.u32 %v643, 7
  %v645 = vsub.s32 %v586, %v644
  %v646 = vrot.slane %v501, %v645
  %v647 = vlaneseq
  %v648 = vshrl.u32 %v647, 7
  %v649 = vsub.s32 %v586, %v648
  %v650 = vrot.slane %v504, %v649
  %v651 = vlaneseq
  %v652 = vshrl.u32 %v651, 7
  %v653 = vsub.s32 %v586, %v652
  %v654 = vrot.slane %v507, %v653
  %v655 = vlaneseq
  %v656 = vshrl.u32 %v655, 7
  %v657 = vsub.s32 %v586, %v656
  %v658 = vrot.slane %v510, %v657
  %v659 = vlaneseq
  %v660 = vshrl.u32 %v659, 7
  %v661 = vsub.s32 %v586, %v660
  %v662 = vrot.slane %v513, %v661
  %v663 = vlaneseq
  %v664 = vshrl.u32 %v663, 7
  %v665 = vsub.s32 %v586, %v664
  %v666 = vrot.slane %v516, %v665
  %v667 = vlaneseq
  %v668 = vshrl.u32 %v667, 7
  %v669 = vsub.s32 %v586, %v668
  %v670 = vrot.slane %v519, %v669
  %v671 = vlaneseq
  %v672 = vshrl.u32 %v671, 7
  %v673 = vsub.s32 %v586, %v672
  %v674 = vrot.slane %v522, %v673
  %v675 = vlaneseq
  %v676 = vshrl.u32 %v675, 7
  %v677 = vsub.s32 %v586, %v676
  %v678 = vrot.slane %v525, %v677
  %v679 = vlaneseq
  %v680 = vshrl.u32 %v679, 7
  %v681 = vsub.s32 %v586, %v680
  %v682 = vrot.slane %v528, %v681
  %v683 = vlaneseq
  %v684 = vshrl.u32 %v683, 7
  %v685 = vsub.s32 %v586, %v684
  %v686 = vrot.slane %v531, %v685
  %v687 = vlaneseq
  %v688 = vshrl.u32 %v687, 7
  %v689 = vsub.s32 %v586, %v688
  %v690 = vrot.slane %v534, %v689
  %v691 = vlaneseq
  %v692 = vshrl.u32 %v691, 7
  %v693 = vsub.s32 %v586, %v692
  %v694 = vrot.slane %v537, %v693
  %v695 = vlaneseq
  %v696 = vshrl.u32 %v695, 7
  %v697 = vsub.s32 %v586, %v696
  %v698 = vrot.slane %v540, %v697
  %v699 = vlaneseq
  %v700 = vshrl.u32 %v699, 7
  %v701 = vsub.s32 %v586, %v700
  %v702 = vrot.slane %v543, %v701
  %v703 = vlaneseq
  %v704 = vshrl.u32 %v703, 7
  %v705 = vsub.s32 %v586, %v704
  %v706 = vrot.slane %v546, %v705
  %v707 = vlaneseq
  %v708 = vshrl.u32 %v707, 7
  %v709 = vsub.s32 %v586, %v708
  %v710 = vrot.slane %v549, %v709
  %v711 = vlaneseq
  %v712 = vshrl.u32 %v711, 7
  %v713 = vsub.s32 %v586, %v712
  %v714 = vrot.slane %v552, %v713
  %vm715 = vcmask 1041409
  %v716 = vsel %vm715, %v594, %v590
  %vm717 = vcmask 1042434
  %v718 = vsel %vm717, %v598, %v716
  %vm719 = vcmask 1043459
  %v720 = vsel %vm719, %v602, %v718
  %vm721 = vcmask 1044484
  %v722 = vsel %vm721, %v606, %v720
  %vm723 = vcmask 1045509
  %v724 = vsel %vm723, %v610, %v722
  %vm725 = vcmask 1046534
  %v726 = vsel %vm725, %v614, %v724
  %vm727 = vcmask 1047559
  %v728 = vsel %vm727, %v618, %v726
  %v729 = vsel %vm715, %v626, %v622
  %v730 = vsel %vm717, %v630, %v729
  %v731 = vsel %vm719, %v634, %v730
  %v732 = vsel %vm721, %v638, %v731
  %v733 = vsel %vm723, %v642, %v732
  %v734 = vsel %vm725, %v646, %v733
  %v735 = vsel %vm727, %v650, %v734
  %v736 = vsel %vm715, %v658, %v654
  %v737 = vsel %vm717, %v662, %v736
  %v738 = vsel %vm719, %v666, %v737
  %v739 = vsel %vm721, %v670, %v738
  %v740 = vsel %vm723, %v674, %v739
  %v741 = vsel %vm725, %v678, %v740
  %v742 = vsel %vm727, %v682, %v741
  %v743 = vsel %vm715, %v690, %v686
  %v744 = vsel %vm717, %v694, %v743
  %v745 = vsel %vm719, %v698, %v744
  %v746 = vsel %vm721, %v702, %v745
  %v747 = vsel %vm723, %v706, %v746
  %v748 = vsel %vm725, %v710, %v747
  %v749 = vsel %vm727, %v714, %v748
  %vm754 = vcmask 64512
  %v755 = vsel %vm754, %v728, -inf
  %756 = vmax.xlane.f32.xlu0 %v755
  %v757 = vpop.xlane.xlu0 %756
  %v758 = vsel %vm754, %v735, -inf
  %759 = vmax.xlane.f32.xlu0 %v758
  %v760 = vpop.xlane.xlu0 %759
  %v761 = vsel %vm754, %v742, -inf
  %762 = vmax.xlane.f32.xlu0 %v761
  %v763 = vpop.xlane.xlu0 %762
  %v764 = vsel %vm754, %v749, -inf
  %765 = vmax.xlane.f32.xlu0 %v764
  %v766 = vpop.xlane.xlu0 %765
  %v771 = vlaneseq
  %v772 = vshrl.u32 %v771, 7
  %v773 = vsub.s32 0, %v772
  %v774 = vrot.slane %v757, %v773
  %v775 = vlaneseq
  %v776 = vshrl.u32 %v775, 7
  %v777 = vsub.s32 1, %v776
  %v778 = vrot.slane %v757, %v777
  %v779 = vlaneseq
  %v780 = vshrl.u32 %v779, 7
  %v781 = vsub.s32 2, %v780
  %v782 = vrot.slane %v757, %v781
  %v783 = vlaneseq
  %v784 = vshrl.u32 %v783, 7
  %v785 = vsub.s32 3, %v784
  %v786 = vrot.slane %v757, %v785
  %v787 = vlaneseq
  %v788 = vshrl.u32 %v787, 7
  %v789 = vsub.s32 4, %v788
  %v790 = vrot.slane %v757, %v789
  %v791 = vlaneseq
  %v792 = vshrl.u32 %v791, 7
  %v793 = vsub.s32 5, %v792
  %v794 = vrot.slane %v757, %v793
  %v795 = vlaneseq
  %v796 = vshrl.u32 %v795, 7
  %v797 = vsub.s32 6, %v796
  %v798 = vrot.slane %v757, %v797
  %v799 = vlaneseq
  %v800 = vshrl.u32 %v799, 7
  %v801 = vsub.s32 7, %v800
  %v802 = vrot.slane %v757, %v801
  %v803 = vlaneseq
  %v804 = vshrl.u32 %v803, 7
  %v805 = vsub.s32 0, %v804
  %v806 = vrot.slane %v760, %v805
  %v807 = vlaneseq
  %v808 = vshrl.u32 %v807, 7
  %v809 = vsub.s32 1, %v808
  %v810 = vrot.slane %v760, %v809
  %v811 = vlaneseq
  %v812 = vshrl.u32 %v811, 7
  %v813 = vsub.s32 2, %v812
  %v814 = vrot.slane %v760, %v813
  %v815 = vlaneseq
  %v816 = vshrl.u32 %v815, 7
  %v817 = vsub.s32 3, %v816
  %v818 = vrot.slane %v760, %v817
  %v819 = vlaneseq
  %v820 = vshrl.u32 %v819, 7
  %v821 = vsub.s32 4, %v820
  %v822 = vrot.slane %v760, %v821
  %v823 = vlaneseq
  %v824 = vshrl.u32 %v823, 7
  %v825 = vsub.s32 5, %v824
  %v826 = vrot.slane %v760, %v825
  %v827 = vlaneseq
  %v828 = vshrl.u32 %v827, 7
  %v829 = vsub.s32 6, %v828
  %v830 = vrot.slane %v760, %v829
  %v831 = vlaneseq
  %v832 = vshrl.u32 %v831, 7
  %v833 = vsub.s32 7, %v832
  %v834 = vrot.slane %v760, %v833
  %v835 = vlaneseq
  %v836 = vshrl.u32 %v835, 7
  %v837 = vsub.s32 0, %v836
  %v838 = vrot.slane %v763, %v837
  %v839 = vlaneseq
  %v840 = vshrl.u32 %v839, 7
  %v841 = vsub.s32 1, %v840
  %v842 = vrot.slane %v763, %v841
  %v843 = vlaneseq
  %v844 = vshrl.u32 %v843, 7
  %v845 = vsub.s32 2, %v844
  %v846 = vrot.slane %v763, %v845
  %v847 = vlaneseq
  %v848 = vshrl.u32 %v847, 7
  %v849 = vsub.s32 3, %v848
  %v850 = vrot.slane %v763, %v849
  %v851 = vlaneseq
  %v852 = vshrl.u32 %v851, 7
  %v853 = vsub.s32 4, %v852
  %v854 = vrot.slane %v763, %v853
  %v855 = vlaneseq
  %v856 = vshrl.u32 %v855, 7
  %v857 = vsub.s32 5, %v856
  %v858 = vrot.slane %v763, %v857
  %v859 = vlaneseq
  %v860 = vshrl.u32 %v859, 7
  %v861 = vsub.s32 6, %v860
  %v862 = vrot.slane %v763, %v861
  %v863 = vlaneseq
  %v864 = vshrl.u32 %v863, 7
  %v865 = vsub.s32 7, %v864
  %v866 = vrot.slane %v763, %v865
  %v867 = vlaneseq
  %v868 = vshrl.u32 %v867, 7
  %v869 = vsub.s32 0, %v868
  %v870 = vrot.slane %v766, %v869
  %v871 = vlaneseq
  %v872 = vshrl.u32 %v871, 7
  %v873 = vsub.s32 1, %v872
  %v874 = vrot.slane %v766, %v873
  %v875 = vlaneseq
  %v876 = vshrl.u32 %v875, 7
  %v877 = vsub.s32 2, %v876
  %v878 = vrot.slane %v766, %v877
  %v879 = vlaneseq
  %v880 = vshrl.u32 %v879, 7
  %v881 = vsub.s32 3, %v880
  %v882 = vrot.slane %v766, %v881
  %v883 = vlaneseq
  %v884 = vshrl.u32 %v883, 7
  %v885 = vsub.s32 4, %v884
  %v886 = vrot.slane %v766, %v885
  %v887 = vlaneseq
  %v888 = vshrl.u32 %v887, 7
  %v889 = vsub.s32 5, %v888
  %v890 = vrot.slane %v766, %v889
  %v891 = vlaneseq
  %v892 = vshrl.u32 %v891, 7
  %v893 = vsub.s32 6, %v892
  %v894 = vrot.slane %v766, %v893
  %v895 = vlaneseq
  %v896 = vshrl.u32 %v895, 7
  %v897 = vsub.s32 7, %v896
  %v898 = vrot.slane %v766, %v897
  %v931 = vsub.f32 %v459, %v774
  %v932 = vsub.f32 %v462, %v778
  %v933 = vsub.f32 %v465, %v782
  %v934 = vsub.f32 %v468, %v786
  %v935 = vsub.f32 %v471, %v790
  %v936 = vsub.f32 %v474, %v794
  %v937 = vsub.f32 %v477, %v798
  %v938 = vsub.f32 %v480, %v802
  %v939 = vsub.f32 %v483, %v806
  %v940 = vsub.f32 %v486, %v810
  %v941 = vsub.f32 %v489, %v814
  %v942 = vsub.f32 %v492, %v818
  %v943 = vsub.f32 %v495, %v822
  %v944 = vsub.f32 %v498, %v826
  %v945 = vsub.f32 %v501, %v830
  %v946 = vsub.f32 %v504, %v834
  %v947 = vsub.f32 %v507, %v838
  %v948 = vsub.f32 %v510, %v842
  %v949 = vsub.f32 %v513, %v846
  %v950 = vsub.f32 %v516, %v850
  %v951 = vsub.f32 %v519, %v854
  %v952 = vsub.f32 %v522, %v858
  %v953 = vsub.f32 %v525, %v862
  %v954 = vsub.f32 %v528, %v866
  %v955 = vsub.f32 %v531, %v870
  %v956 = vsub.f32 %v534, %v874
  %v957 = vsub.f32 %v537, %v878
  %v958 = vsub.f32 %v540, %v882
  %v959 = vsub.f32 %v543, %v886
  %v960 = vsub.f32 %v546, %v890
  %v961 = vsub.f32 %v549, %v894
  %v962 = vsub.f32 %v552, %v898
  %v963 = vmul.f32 %v931, 1.442695
  %v964 = vpow.pop %v963
  %v965 = vmul.f32 %v932, 1.442695
  %v966 = vpow.pop %v965
  %v967 = vmul.f32 %v933, 1.442695
  %v968 = vpow.pop %v967
  %v969 = vmul.f32 %v934, 1.442695
  %v970 = vpow.pop %v969
  %v971 = vmul.f32 %v935, 1.442695
  %v972 = vpow.pop %v971
  %v973 = vmul.f32 %v936, 1.442695
  %v974 = vpow.pop %v973
  %v975 = vmul.f32 %v937, 1.442695
  %v976 = vpow.pop %v975
  %v977 = vmul.f32 %v938, 1.442695
  %v978 = vpow.pop %v977
  %v979 = vmul.f32 %v939, 1.442695
  %v980 = vpow.pop %v979
  %v981 = vmul.f32 %v940, 1.442695
  %v982 = vpow.pop %v981
  %v983 = vmul.f32 %v941, 1.442695
  %v984 = vpow.pop %v983
  %v985 = vmul.f32 %v942, 1.442695
  %v986 = vpow.pop %v985
  %v987 = vmul.f32 %v943, 1.442695
  %v988 = vpow.pop %v987
  %v989 = vmul.f32 %v944, 1.442695
  %v990 = vpow.pop %v989
  %v991 = vmul.f32 %v945, 1.442695
  %v992 = vpow.pop %v991
  %v993 = vmul.f32 %v946, 1.442695
  %v994 = vpow.pop %v993
  %v995 = vmul.f32 %v947, 1.442695
  %v996 = vpow.pop %v995
  %v997 = vmul.f32 %v948, 1.442695
  %v998 = vpow.pop %v997
  %v999 = vmul.f32 %v949, 1.442695
  %v1000 = vpow.pop %v999
  %v1001 = vmul.f32 %v950, 1.442695
  %v1002 = vpow.pop %v1001
  %v1003 = vmul.f32 %v951, 1.442695
  %v1004 = vpow.pop %v1003
  %v1005 = vmul.f32 %v952, 1.442695
  %v1006 = vpow.pop %v1005
  %v1007 = vmul.f32 %v953, 1.442695
  %v1008 = vpow.pop %v1007
  %v1009 = vmul.f32 %v954, 1.442695
  %v1010 = vpow.pop %v1009
  %v1011 = vmul.f32 %v955, 1.442695
  %v1012 = vpow.pop %v1011
  %v1013 = vmul.f32 %v956, 1.442695
  %v1014 = vpow.pop %v1013
  %v1015 = vmul.f32 %v957, 1.442695
  %v1016 = vpow.pop %v1015
  %v1017 = vmul.f32 %v958, 1.442695
  %v1018 = vpow.pop %v1017
  %v1019 = vmul.f32 %v959, 1.442695
  %v1020 = vpow.pop %v1019
  %v1021 = vmul.f32 %v960, 1.442695
  %v1022 = vpow.pop %v1021
  %v1023 = vmul.f32 %v961, 1.442695
  %v1024 = vpow.pop %v1023
  %v1025 = vmul.f32 %v962, 1.442695
  %v1026 = vpow.pop %v1025
  %1059 = vset.pattern.permute.xlu0 0
  %1060 = vperm.xlu0 %1059, %v964
  %v1061 = vpop.permute.xlu0 %1060
  %1062 = vset.pattern.permute.xlu0 0
  %1063 = vperm.xlu0 %1062, %v966
  %v1064 = vpop.permute.xlu0 %1063
  %1065 = vset.pattern.permute.xlu0 0
  %1066 = vperm.xlu0 %1065, %v968
  %v1067 = vpop.permute.xlu0 %1066
  %1068 = vset.pattern.permute.xlu0 0
  %1069 = vperm.xlu0 %1068, %v970
  %v1070 = vpop.permute.xlu0 %1069
  %1071 = vset.pattern.permute.xlu0 0
  %1072 = vperm.xlu0 %1071, %v972
  %v1073 = vpop.permute.xlu0 %1072
  %1074 = vset.pattern.permute.xlu0 0
  %1075 = vperm.xlu0 %1074, %v974
  %v1076 = vpop.permute.xlu0 %1075
  %1077 = vset.pattern.permute.xlu0 0
  %1078 = vperm.xlu0 %1077, %v976
  %v1079 = vpop.permute.xlu0 %1078
  %1080 = vset.pattern.permute.xlu0 0
  %1081 = vperm.xlu0 %1080, %v978
  %v1082 = vpop.permute.xlu0 %1081
  %1083 = vset.pattern.permute.xlu0 0
  %1084 = vperm.xlu0 %1083, %v980
  %v1085 = vpop.permute.xlu0 %1084
  %1086 = vset.pattern.permute.xlu0 0
  %1087 = vperm.xlu0 %1086, %v982
  %v1088 = vpop.permute.xlu0 %1087
  %1089 = vset.pattern.permute.xlu0 0
  %1090 = vperm.xlu0 %1089, %v984
  %v1091 = vpop.permute.xlu0 %1090
  %1092 = vset.pattern.permute.xlu0 0
  %1093 = vperm.xlu0 %1092, %v986
  %v1094 = vpop.permute.xlu0 %1093
  %1095 = vset.pattern.permute.xlu0 0
  %1096 = vperm.xlu0 %1095, %v988
  %v1097 = vpop.permute.xlu0 %1096
  %1098 = vset.pattern.permute.xlu0 0
  %1099 = vperm.xlu0 %1098, %v990
  %v1100 = vpop.permute.xlu0 %1099
  %1101 = vset.pattern.permute.xlu0 0
  %1102 = vperm.xlu0 %1101, %v992
  %v1103 = vpop.permute.xlu0 %1102
  %1104 = vset.pattern.permute.xlu0 0
  %1105 = vperm.xlu0 %1104, %v994
  %v1106 = vpop.permute.xlu0 %1105
  %1107 = vset.pattern.permute.xlu0 0
  %1108 = vperm.xlu0 %1107, %v996
  %v1109 = vpop.permute.xlu0 %1108
  %1110 = vset.pattern.permute.xlu0 0
  %1111 = vperm.xlu0 %1110, %v998
  %v1112 = vpop.permute.xlu0 %1111
  %1113 = vset.pattern.permute.xlu0 0
  %1114 = vperm.xlu0 %1113, %v1000
  %v1115 = vpop.permute.xlu0 %1114
  %1116 = vset.pattern.permute.xlu0 0
  %1117 = vperm.xlu0 %1116, %v1002
  %v1118 = vpop.permute.xlu0 %1117
  %1119 = vset.pattern.permute.xlu0 0
  %1120 = vperm.xlu0 %1119, %v1004
  %v1121 = vpop.permute.xlu0 %1120
  %1122 = vset.pattern.permute.xlu0 0
  %1123 = vperm.xlu0 %1122, %v1006
  %v1124 = vpop.permute.xlu0 %1123
  %1125 = vset.pattern.permute.xlu0 0
  %1126 = vperm.xlu0 %1125, %v1008
  %v1127 = vpop.permute.xlu0 %1126
  %1128 = vset.pattern.permute.xlu0 0
  %1129 = vperm.xlu0 %1128, %v1010
  %v1130 = vpop.permute.xlu0 %1129
  %1131 = vset.pattern.permute.xlu0 0
  %1132 = vperm.xlu0 %1131, %v1012
  %v1133 = vpop.permute.xlu0 %1132
  %1134 = vset.pattern.permute.xlu0 0
  %1135 = vperm.xlu0 %1134, %v1014
  %v1136 = vpop.permute.xlu0 %1135
  %1137 = vset.pattern.permute.xlu0 0
  %1138 = vperm.xlu0 %1137, %v1016
  %v1139 = vpop.permute.xlu0 %1138
  %1140 = vset.pattern.permute.xlu0 0
  %1141 = vperm.xlu0 %1140, %v1018
  %v1142 = vpop.permute.xlu0 %1141
  %1143 = vset.pattern.permute.xlu0 0
  %1144 = vperm.xlu0 %1143, %v1020
  %v1145 = vpop.permute.xlu0 %1144
  %1146 = vset.pattern.permute.xlu0 0
  %1147 = vperm.xlu0 %1146, %v1022
  %v1148 = vpop.permute.xlu0 %1147
  %1149 = vset.pattern.permute.xlu0 0
  %1150 = vperm.xlu0 %1149, %v1024
  %v1151 = vpop.permute.xlu0 %1150
  %1152 = vset.pattern.permute.xlu0 0
  %1153 = vperm.xlu0 %1152, %v1026
  %v1154 = vpop.permute.xlu0 %1153
  %v1155 = vlaneseq
  %v1156 = vshrl.u32 %v1155, 7
  %v1157 = vsub.s32 %v586, %v1156
  %v1158 = vrot.slane %v1061, %v1157
  %v1159 = vlaneseq
  %v1160 = vshrl.u32 %v1159, 7
  %v1161 = vsub.s32 %v586, %v1160
  %v1162 = vrot.slane %v1064, %v1161
  %v1163 = vlaneseq
  %v1164 = vshrl.u32 %v1163, 7
  %v1165 = vsub.s32 %v586, %v1164
  %v1166 = vrot.slane %v1067, %v1165
  %v1167 = vlaneseq
  %v1168 = vshrl.u32 %v1167, 7
  %v1169 = vsub.s32 %v586, %v1168
  %v1170 = vrot.slane %v1070, %v1169
  %v1171 = vlaneseq
  %v1172 = vshrl.u32 %v1171, 7
  %v1173 = vsub.s32 %v586, %v1172
  %v1174 = vrot.slane %v1073, %v1173
  %v1175 = vlaneseq
  %v1176 = vshrl.u32 %v1175, 7
  %v1177 = vsub.s32 %v586, %v1176
  %v1178 = vrot.slane %v1076, %v1177
  %v1179 = vlaneseq
  %v1180 = vshrl.u32 %v1179, 7
  %v1181 = vsub.s32 %v586, %v1180
  %v1182 = vrot.slane %v1079, %v1181
  %v1183 = vlaneseq
  %v1184 = vshrl.u32 %v1183, 7
  %v1185 = vsub.s32 %v586, %v1184
  %v1186 = vrot.slane %v1082, %v1185
  %v1187 = vlaneseq
  %v1188 = vshrl.u32 %v1187, 7
  %v1189 = vsub.s32 %v586, %v1188
  %v1190 = vrot.slane %v1085, %v1189
  %v1191 = vlaneseq
  %v1192 = vshrl.u32 %v1191, 7
  %v1193 = vsub.s32 %v586, %v1192
  %v1194 = vrot.slane %v1088, %v1193
  %v1195 = vlaneseq
  %v1196 = vshrl.u32 %v1195, 7
  %v1197 = vsub.s32 %v586, %v1196
  %v1198 = vrot.slane %v1091, %v1197
  %v1199 = vlaneseq
  %v1200 = vshrl.u32 %v1199, 7
  %v1201 = vsub.s32 %v586, %v1200
  %v1202 = vrot.slane %v1094, %v1201
  %v1203 = vlaneseq
  %v1204 = vshrl.u32 %v1203, 7
  %v1205 = vsub.s32 %v586, %v1204
  %v1206 = vrot.slane %v1097, %v1205
  %v1207 = vlaneseq
  %v1208 = vshrl.u32 %v1207, 7
  %v1209 = vsub.s32 %v586, %v1208
  %v1210 = vrot.slane %v1100, %v1209
  %v1211 = vlaneseq
  %v1212 = vshrl.u32 %v1211, 7
  %v1213 = vsub.s32 %v586, %v1212
  %v1214 = vrot.slane %v1103, %v1213
  %v1215 = vlaneseq
  %v1216 = vshrl.u32 %v1215, 7
  %v1217 = vsub.s32 %v586, %v1216
  %v1218 = vrot.slane %v1106, %v1217
  %v1219 = vlaneseq
  %v1220 = vshrl.u32 %v1219, 7
  %v1221 = vsub.s32 %v586, %v1220
  %v1222 = vrot.slane %v1109, %v1221
  %v1223 = vlaneseq
  %v1224 = vshrl.u32 %v1223, 7
  %v1225 = vsub.s32 %v586, %v1224
  %v1226 = vrot.slane %v1112, %v1225
  %v1227 = vlaneseq
  %v1228 = vshrl.u32 %v1227, 7
  %v1229 = vsub.s32 %v586, %v1228
  %v1230 = vrot.slane %v1115, %v1229
  %v1231 = vlaneseq
  %v1232 = vshrl.u32 %v1231, 7
  %v1233 = vsub.s32 %v586, %v1232
  %v1234 = vrot.slane %v1118, %v1233
  %v1235 = vlaneseq
  %v1236 = vshrl.u32 %v1235, 7
  %v1237 = vsub.s32 %v586, %v1236
  %v1238 = vrot.slane %v1121, %v1237
  %v1239 = vlaneseq
  %v1240 = vshrl.u32 %v1239, 7
  %v1241 = vsub.s32 %v586, %v1240
  %v1242 = vrot.slane %v1124, %v1241
  %v1243 = vlaneseq
  %v1244 = vshrl.u32 %v1243, 7
  %v1245 = vsub.s32 %v586, %v1244
  %v1246 = vrot.slane %v1127, %v1245
  %v1247 = vlaneseq
  %v1248 = vshrl.u32 %v1247, 7
  %v1249 = vsub.s32 %v586, %v1248
  %v1250 = vrot.slane %v1130, %v1249
  %v1251 = vlaneseq
  %v1252 = vshrl.u32 %v1251, 7
  %v1253 = vsub.s32 %v586, %v1252
  %v1254 = vrot.slane %v1133, %v1253
  %v1255 = vlaneseq
  %v1256 = vshrl.u32 %v1255, 7
  %v1257 = vsub.s32 %v586, %v1256
  %v1258 = vrot.slane %v1136, %v1257
  %v1259 = vlaneseq
  %v1260 = vshrl.u32 %v1259, 7
  %v1261 = vsub.s32 %v586, %v1260
  %v1262 = vrot.slane %v1139, %v1261
  %v1263 = vlaneseq
  %v1264 = vshrl.u32 %v1263, 7
  %v1265 = vsub.s32 %v586, %v1264
  %v1266 = vrot.slane %v1142, %v1265
  %v1267 = vlaneseq
  %v1268 = vshrl.u32 %v1267, 7
  %v1269 = vsub.s32 %v586, %v1268
  %v1270 = vrot.slane %v1145, %v1269
  %v1271 = vlaneseq
  %v1272 = vshrl.u32 %v1271, 7
  %v1273 = vsub.s32 %v586, %v1272
  %v1274 = vrot.slane %v1148, %v1273
  %v1275 = vlaneseq
  %v1276 = vshrl.u32 %v1275, 7
  %v1277 = vsub.s32 %v586, %v1276
  %v1278 = vrot.slane %v1151, %v1277
  %v1279 = vlaneseq
  %v1280 = vshrl.u32 %v1279, 7
  %v1281 = vsub.s32 %v586, %v1280
  %v1282 = vrot.slane %v1154, %v1281
  %v1283 = vsel %vm715, %v1162, %v1158
  %v1284 = vsel %vm717, %v1166, %v1283
  %v1285 = vsel %vm719, %v1170, %v1284
  %v1286 = vsel %vm721, %v1174, %v1285
  %v1287 = vsel %vm723, %v1178, %v1286
  %v1288 = vsel %vm725, %v1182, %v1287
  %v1289 = vsel %vm727, %v1186, %v1288
  %v1290 = vsel %vm715, %v1194, %v1190
  %v1291 = vsel %vm717, %v1198, %v1290
  %v1292 = vsel %vm719, %v1202, %v1291
  %v1293 = vsel %vm721, %v1206, %v1292
  %v1294 = vsel %vm723, %v1210, %v1293
  %v1295 = vsel %vm725, %v1214, %v1294
  %v1296 = vsel %vm727, %v1218, %v1295
  %v1297 = vsel %vm715, %v1226, %v1222
  %v1298 = vsel %vm717, %v1230, %v1297
  %v1299 = vsel %vm719, %v1234, %v1298
  %v1300 = vsel %vm721, %v1238, %v1299
  %v1301 = vsel %vm723, %v1242, %v1300
  %v1302 = vsel %vm725, %v1246, %v1301
  %v1303 = vsel %vm727, %v1250, %v1302
  %v1304 = vsel %vm715, %v1258, %v1254
  %v1305 = vsel %vm717, %v1262, %v1304
  %v1306 = vsel %vm719, %v1266, %v1305
  %v1307 = vsel %vm721, %v1270, %v1306
  %v1308 = vsel %vm723, %v1274, %v1307
  %v1309 = vsel %vm725, %v1278, %v1308
  %v1310 = vsel %vm727, %v1282, %v1309
  %v1315 = vsel %vm754, %v1289, 0.0
  %1316 = vadd.xlane.f32.xlu0 %v1315
  %v1317 = vpop.xlane.xlu0 %1316
  %v1318 = vsel %vm754, %v1296, 0.0
  %1319 = vadd.xlane.f32.xlu0 %v1318
  %v1320 = vpop.xlane.xlu0 %1319
  %v1321 = vsel %vm754, %v1303, 0.0
  %1322 = vadd.xlane.f32.xlu0 %v1321
  %v1323 = vpop.xlane.xlu0 %1322
  %v1324 = vsel %vm754, %v1310, 0.0
  %1325 = vadd.xlane.f32.xlu0 %v1324
  %v1326 = vpop.xlane.xlu0 %1325
  %v1327 = vrcp.pop %v1317
  %v1328 = vrcp.pop %v1320
  %v1329 = vrcp.pop %v1323
  %v1330 = vrcp.pop %v1326
  %v1335 = vlaneseq
  %v1336 = vshrl.u32 %v1335, 7
  %v1337 = vsub.s32 0, %v1336
  %v1338 = vrot.slane %v1327, %v1337
  %v1339 = vlaneseq
  %v1340 = vshrl.u32 %v1339, 7
  %v1341 = vsub.s32 1, %v1340
  %v1342 = vrot.slane %v1327, %v1341
  %v1343 = vlaneseq
  %v1344 = vshrl.u32 %v1343, 7
  %v1345 = vsub.s32 2, %v1344
  %v1346 = vrot.slane %v1327, %v1345
  %v1347 = vlaneseq
  %v1348 = vshrl.u32 %v1347, 7
  %v1349 = vsub.s32 3, %v1348
  %v1350 = vrot.slane %v1327, %v1349
  %v1351 = vlaneseq
  %v1352 = vshrl.u32 %v1351, 7
  %v1353 = vsub.s32 4, %v1352
  %v1354 = vrot.slane %v1327, %v1353
  %v1355 = vlaneseq
  %v1356 = vshrl.u32 %v1355, 7
  %v1357 = vsub.s32 5, %v1356
  %v1358 = vrot.slane %v1327, %v1357
  %v1359 = vlaneseq
  %v1360 = vshrl.u32 %v1359, 7
  %v1361 = vsub.s32 6, %v1360
  %v1362 = vrot.slane %v1327, %v1361
  %v1363 = vlaneseq
  %v1364 = vshrl.u32 %v1363, 7
  %v1365 = vsub.s32 7, %v1364
  %v1366 = vrot.slane %v1327, %v1365
  %v1367 = vlaneseq
  %v1368 = vshrl.u32 %v1367, 7
  %v1369 = vsub.s32 0, %v1368
  %v1370 = vrot.slane %v1328, %v1369
  %v1371 = vlaneseq
  %v1372 = vshrl.u32 %v1371, 7
  %v1373 = vsub.s32 1, %v1372
  %v1374 = vrot.slane %v1328, %v1373
  %v1375 = vlaneseq
  %v1376 = vshrl.u32 %v1375, 7
  %v1377 = vsub.s32 2, %v1376
  %v1378 = vrot.slane %v1328, %v1377
  %v1379 = vlaneseq
  %v1380 = vshrl.u32 %v1379, 7
  %v1381 = vsub.s32 3, %v1380
  %v1382 = vrot.slane %v1328, %v1381
  %v1383 = vlaneseq
  %v1384 = vshrl.u32 %v1383, 7
  %v1385 = vsub.s32 4, %v1384
  %v1386 = vrot.slane %v1328, %v1385
  %v1387 = vlaneseq
  %v1388 = vshrl.u32 %v1387, 7
  %v1389 = vsub.s32 5, %v1388
  %v1390 = vrot.slane %v1328, %v1389
  %v1391 = vlaneseq
  %v1392 = vshrl.u32 %v1391, 7
  %v1393 = vsub.s32 6, %v1392
  %v1394 = vrot.slane %v1328, %v1393
  %v1395 = vlaneseq
  %v1396 = vshrl.u32 %v1395, 7
  %v1397 = vsub.s32 7, %v1396
  %v1398 = vrot.slane %v1328, %v1397
  %v1399 = vlaneseq
  %v1400 = vshrl.u32 %v1399, 7
  %v1401 = vsub.s32 0, %v1400
  %v1402 = vrot.slane %v1329, %v1401
  %v1403 = vlaneseq
  %v1404 = vshrl.u32 %v1403, 7
  %v1405 = vsub.s32 1, %v1404
  %v1406 = vrot.slane %v1329, %v1405
  %v1407 = vlaneseq
  %v1408 = vshrl.u32 %v1407, 7
  %v1409 = vsub.s32 2, %v1408
  %v1410 = vrot.slane %v1329, %v1409
  %v1411 = vlaneseq
  %v1412 = vshrl.u32 %v1411, 7
  %v1413 = vsub.s32 3, %v1412
  %v1414 = vrot.slane %v1329, %v1413
  %v1415 = vlaneseq
  %v1416 = vshrl.u32 %v1415, 7
  %v1417 = vsub.s32 4, %v1416
  %v1418 = vrot.slane %v1329, %v1417
  %v1419 = vlaneseq
  %v1420 = vshrl.u32 %v1419, 7
  %v1421 = vsub.s32 5, %v1420
  %v1422 = vrot.slane %v1329, %v1421
  %v1423 = vlaneseq
  %v1424 = vshrl.u32 %v1423, 7
  %v1425 = vsub.s32 6, %v1424
  %v1426 = vrot.slane %v1329, %v1425
  %v1427 = vlaneseq
  %v1428 = vshrl.u32 %v1427, 7
  %v1429 = vsub.s32 7, %v1428
  %v1430 = vrot.slane %v1329, %v1429
  %v1431 = vlaneseq
  %v1432 = vshrl.u32 %v1431, 7
  %v1433 = vsub.s32 0, %v1432
  %v1434 = vrot.slane %v1330, %v1433
  %v1435 = vlaneseq
  %v1436 = vshrl.u32 %v1435, 7
  %v1437 = vsub.s32 1, %v1436
  %v1438 = vrot.slane %v1330, %v1437
  %v1439 = vlaneseq
  %v1440 = vshrl.u32 %v1439, 7
  %v1441 = vsub.s32 2, %v1440
  %v1442 = vrot.slane %v1330, %v1441
  %v1443 = vlaneseq
  %v1444 = vshrl.u32 %v1443, 7
  %v1445 = vsub.s32 3, %v1444
  %v1446 = vrot.slane %v1330, %v1445
  %v1447 = vlaneseq
  %v1448 = vshrl.u32 %v1447, 7
  %v1449 = vsub.s32 4, %v1448
  %v1450 = vrot.slane %v1330, %v1449
  %v1451 = vlaneseq
  %v1452 = vshrl.u32 %v1451, 7
  %v1453 = vsub.s32 5, %v1452
  %v1454 = vrot.slane %v1330, %v1453
  %v1455 = vlaneseq
  %v1456 = vshrl.u32 %v1455, 7
  %v1457 = vsub.s32 6, %v1456
  %v1458 = vrot.slane %v1330, %v1457
  %v1459 = vlaneseq
  %v1460 = vshrl.u32 %v1459, 7
  %v1461 = vsub.s32 7, %v1460
  %v1462 = vrot.slane %v1330, %v1461
  %v1495 = vmul.f32 %v964, %v1338
  %v1496 = vmul.f32 %v966, %v1342
  %v1497 = vmul.f32 %v968, %v1346
  %v1498 = vmul.f32 %v970, %v1350
  %v1499 = vmul.f32 %v972, %v1354
  %v1500 = vmul.f32 %v974, %v1358
  %v1501 = vmul.f32 %v976, %v1362
  %v1502 = vmul.f32 %v978, %v1366
  %v1503 = vmul.f32 %v980, %v1370
  %v1504 = vmul.f32 %v982, %v1374
  %v1505 = vmul.f32 %v984, %v1378
  %v1506 = vmul.f32 %v986, %v1382
  %v1507 = vmul.f32 %v988, %v1386
  %v1508 = vmul.f32 %v990, %v1390
  %v1509 = vmul.f32 %v992, %v1394
  %v1510 = vmul.f32 %v994, %v1398
  %v1511 = vmul.f32 %v996, %v1402
  %v1512 = vmul.f32 %v998, %v1406
  %v1513 = vmul.f32 %v1000, %v1410
  %v1514 = vmul.f32 %v1002, %v1414
  %v1515 = vmul.f32 %v1004, %v1418
  %v1516 = vmul.f32 %v1006, %v1422
  %v1517 = vmul.f32 %v1008, %v1426
  %v1518 = vmul.f32 %v1010, %v1430
  %v1519 = vmul.f32 %v1012, %v1434
  %v1520 = vmul.f32 %v1014, %v1438
  %v1521 = vmul.f32 %v1016, %v1442
  %v1522 = vmul.f32 %v1018, %v1446
  %v1523 = vmul.f32 %v1020, %v1450
  %v1524 = vmul.f32 %v1022, %v1454
  %v1525 = vmul.f32 %v1024, %v1458
  %v1526 = vmul.f32 %v1026, %v1462
  %1528 = vset.pattern.permute.xlu0 0
  %1529 = vperm.xlu0 %1528, %v1495
  %v1530 = vpop.permute.xlu0 %1529
  %1533 = vset.pattern.permute.xlu0 0
  %1534 = vperm.xlu0 %1533, %v1496
  %v1535 = vpop.permute.xlu0 %1534
  %1538 = vset.pattern.permute.xlu0 0
  %1539 = vperm.xlu0 %1538, %v1497
  %v1540 = vpop.permute.xlu0 %1539
  %1543 = vset.pattern.permute.xlu0 0
  %1544 = vperm.xlu0 %1543, %v1498
  %v1545 = vpop.permute.xlu0 %1544
  %1548 = vset.pattern.permute.xlu0 0
  %1549 = vperm.xlu0 %1548, %v1499
  %v1550 = vpop.permute.xlu0 %1549
  %1553 = vset.pattern.permute.xlu0 0
  %1554 = vperm.xlu0 %1553, %v1500
  %v1555 = vpop.permute.xlu0 %1554
  %1558 = vset.pattern.permute.xlu0 0
  %1559 = vperm.xlu0 %1558, %v1501
  %v1560 = vpop.permute.xlu0 %1559
  %1563 = vset.pattern.permute.xlu0 0
  %1564 = vperm.xlu0 %1563, %v1502
  %v1565 = vpop.permute.xlu0 %1564
  %1568 = vset.pattern.permute.xlu0 0
  %1569 = vperm.xlu0 %1568, %v1503
  %v1570 = vpop.permute.xlu0 %1569
  %1573 = vset.pattern.permute.xlu0 0
  %1574 = vperm.xlu0 %1573, %v1504
  %v1575 = vpop.permute.xlu0 %1574
  %1578 = vset.pattern.permute.xlu0 0
  %1579 = vperm.xlu0 %1578, %v1505
  %v1580 = vpop.permute.xlu0 %1579
  %1583 = vset.pattern.permute.xlu0 0
  %1584 = vperm.xlu0 %1583, %v1506
  %v1585 = vpop.permute.xlu0 %1584
  %1588 = vset.pattern.permute.xlu0 0
  %1589 = vperm.xlu0 %1588, %v1507
  %v1590 = vpop.permute.xlu0 %1589
  %1593 = vset.pattern.permute.xlu0 0
  %1594 = vperm.xlu0 %1593, %v1508
  %v1595 = vpop.permute.xlu0 %1594
  %1598 = vset.pattern.permute.xlu0 0
  %1599 = vperm.xlu0 %1598, %v1509
  %v1600 = vpop.permute.xlu0 %1599
  %1603 = vset.pattern.permute.xlu0 0
  %1604 = vperm.xlu0 %1603, %v1510
  %v1605 = vpop.permute.xlu0 %1604
  %1608 = vset.pattern.permute.xlu0 0
  %1609 = vperm.xlu0 %1608, %v1511
  %v1610 = vpop.permute.xlu0 %1609
  %1613 = vset.pattern.permute.xlu0 0
  %1614 = vperm.xlu0 %1613, %v1512
  %v1615 = vpop.permute.xlu0 %1614
  %1618 = vset.pattern.permute.xlu0 0
  %1619 = vperm.xlu0 %1618, %v1513
  %v1620 = vpop.permute.xlu0 %1619
  %1623 = vset.pattern.permute.xlu0 0
  %1624 = vperm.xlu0 %1623, %v1514
  %v1625 = vpop.permute.xlu0 %1624
  %1628 = vset.pattern.permute.xlu0 0
  %1629 = vperm.xlu0 %1628, %v1515
  %v1630 = vpop.permute.xlu0 %1629
  %1633 = vset.pattern.permute.xlu0 0
  %1634 = vperm.xlu0 %1633, %v1516
  %v1635 = vpop.permute.xlu0 %1634
  %1638 = vset.pattern.permute.xlu0 0
  %1639 = vperm.xlu0 %1638, %v1517
  %v1640 = vpop.permute.xlu0 %1639
  %1643 = vset.pattern.permute.xlu0 0
  %1644 = vperm.xlu0 %1643, %v1518
  %v1645 = vpop.permute.xlu0 %1644
  %1648 = vset.pattern.permute.xlu0 0
  %1649 = vperm.xlu0 %1648, %v1519
  %v1650 = vpop.permute.xlu0 %1649
  %1653 = vset.pattern.permute.xlu0 0
  %1654 = vperm.xlu0 %1653, %v1520
  %v1655 = vpop.permute.xlu0 %1654
  %1658 = vset.pattern.permute.xlu0 0
  %1659 = vperm.xlu0 %1658, %v1521
  %v1660 = vpop.permute.xlu0 %1659
  %1663 = vset.pattern.permute.xlu0 0
  %1664 = vperm.xlu0 %1663, %v1522
  %v1665 = vpop.permute.xlu0 %1664
  %1668 = vset.pattern.permute.xlu0 0
  %1669 = vperm.xlu0 %1668, %v1523
  %v1670 = vpop.permute.xlu0 %1669
  %1673 = vset.pattern.permute.xlu0 0
  %1674 = vperm.xlu0 %1673, %v1524
  %v1675 = vpop.permute.xlu0 %1674
  %1678 = vset.pattern.permute.xlu0 0
  %1679 = vperm.xlu0 %1678, %v1525
  %v1680 = vpop.permute.xlu0 %1679
  %1683 = vset.pattern.permute.xlu0 0
  %1684 = vperm.xlu0 %1683, %v1526
  %v1685 = vpop.permute.xlu0 %1684
  %v1687 = vmul.f32 %v14, %v1530
  %v1688 = vmul.f32 %v15, %v1535
  %v1689 = vmul.f32 %v16, %v1540
  %v1690 = vmul.f32 %v17, %v1545
  %v1691 = vmul.f32 %v18, %v1550
  %v1692 = vmul.f32 %v19, %v1555
  %v1693 = vmul.f32 %v20, %v1560
  %v1694 = vmul.f32 %v21, %v1565
  %v1695 = vmul.f32 %v22, %v1570
  %v1696 = vmul.f32 %v23, %v1575
  %v1697 = vmul.f32 %v24, %v1580
  %v1698 = vmul.f32 %v25, %v1585
  %v1699 = vmul.f32 %v26, %v1590
  %v1700 = vmul.f32 %v27, %v1595
  %v1701 = vmul.f32 %v28, %v1600
  %v1702 = vmul.f32 %v29, %v1605
  %v1703 = vmul.f32 %v30, %v1610
  %v1704 = vmul.f32 %v31, %v1615
  %v1705 = vmul.f32 %v32, %v1620
  %v1706 = vmul.f32 %v33, %v1625
  %v1707 = vmul.f32 %v34, %v1630
  %v1708 = vmul.f32 %v35, %v1635
  %v1709 = vmul.f32 %v36, %v1640
  %v1710 = vmul.f32 %v37, %v1645
  %v1711 = vmul.f32 %v38, %v1650
  %v1712 = vmul.f32 %v39, %v1655
  %v1713 = vmul.f32 %v40, %v1660
  %v1714 = vmul.f32 %v41, %v1665
  %v1715 = vmul.f32 %v42, %v1670
  %v1716 = vmul.f32 %v43, %v1675
  %v1717 = vmul.f32 %v44, %v1680
  %v1718 = vmul.f32 %v45, %v1685
  %v1719 = vsel %vm55, %v1687, 0.0
  %v1720 = vrot.slane %v1719, 4
  %v1721 = vadd.f32 %v1719, %v1720
  %v1722 = vrot.slane %v1721, 2
  %v1723 = vadd.f32 %v1721, %v1722
  %v1724 = vrot.slane %v1723, 1
  %v1725 = vadd.f32 %v1723, %v1724
  %v1726 = vsel %vm55, %v1688, 0.0
  %v1727 = vrot.slane %v1726, 4
  %v1728 = vadd.f32 %v1726, %v1727
  %v1729 = vrot.slane %v1728, 2
  %v1730 = vadd.f32 %v1728, %v1729
  %v1731 = vrot.slane %v1730, 1
  %v1732 = vadd.f32 %v1730, %v1731
  %v1733 = vsel %vm55, %v1689, 0.0
  %v1734 = vrot.slane %v1733, 4
  %v1735 = vadd.f32 %v1733, %v1734
  %v1736 = vrot.slane %v1735, 2
  %v1737 = vadd.f32 %v1735, %v1736
  %v1738 = vrot.slane %v1737, 1
  %v1739 = vadd.f32 %v1737, %v1738
  %v1740 = vsel %vm55, %v1690, 0.0
  %v1741 = vrot.slane %v1740, 4
  %v1742 = vadd.f32 %v1740, %v1741
  %v1743 = vrot.slane %v1742, 2
  %v1744 = vadd.f32 %v1742, %v1743
  %v1745 = vrot.slane %v1744, 1
  %v1746 = vadd.f32 %v1744, %v1745
  %v1747 = vsel %vm55, %v1691, 0.0
  %v1748 = vrot.slane %v1747, 4
  %v1749 = vadd.f32 %v1747, %v1748
  %v1750 = vrot.slane %v1749, 2
  %v1751 = vadd.f32 %v1749, %v1750
  %v1752 = vrot.slane %v1751, 1
  %v1753 = vadd.f32 %v1751, %v1752
  %v1754 = vsel %vm55, %v1692, 0.0
  %v1755 = vrot.slane %v1754, 4
  %v1756 = vadd.f32 %v1754, %v1755
  %v1757 = vrot.slane %v1756, 2
  %v1758 = vadd.f32 %v1756, %v1757
  %v1759 = vrot.slane %v1758, 1
  %v1760 = vadd.f32 %v1758, %v1759
  %v1761 = vsel %vm55, %v1693, 0.0
  %v1762 = vrot.slane %v1761, 4
  %v1763 = vadd.f32 %v1761, %v1762
  %v1764 = vrot.slane %v1763, 2
  %v1765 = vadd.f32 %v1763, %v1764
  %v1766 = vrot.slane %v1765, 1
  %v1767 = vadd.f32 %v1765, %v1766
  %v1768 = vsel %vm55, %v1694, 0.0
  %v1769 = vrot.slane %v1768, 4
  %v1770 = vadd.f32 %v1768, %v1769
  %v1771 = vrot.slane %v1770, 2
  %v1772 = vadd.f32 %v1770, %v1771
  %v1773 = vrot.slane %v1772, 1
  %v1774 = vadd.f32 %v1772, %v1773
  %v1775 = vsel %vm55, %v1695, 0.0
  %v1776 = vrot.slane %v1775, 4
  %v1777 = vadd.f32 %v1775, %v1776
  %v1778 = vrot.slane %v1777, 2
  %v1779 = vadd.f32 %v1777, %v1778
  %v1780 = vrot.slane %v1779, 1
  %v1781 = vadd.f32 %v1779, %v1780
  %v1782 = vsel %vm55, %v1696, 0.0
  %v1783 = vrot.slane %v1782, 4
  %v1784 = vadd.f32 %v1782, %v1783
  %v1785 = vrot.slane %v1784, 2
  %v1786 = vadd.f32 %v1784, %v1785
  %v1787 = vrot.slane %v1786, 1
  %v1788 = vadd.f32 %v1786, %v1787
  %v1789 = vsel %vm55, %v1697, 0.0
  %v1790 = vrot.slane %v1789, 4
  %v1791 = vadd.f32 %v1789, %v1790
  %v1792 = vrot.slane %v1791, 2
  %v1793 = vadd.f32 %v1791, %v1792
  %v1794 = vrot.slane %v1793, 1
  %v1795 = vadd.f32 %v1793, %v1794
  %v1796 = vsel %vm55, %v1698, 0.0
  %v1797 = vrot.slane %v1796, 4
  %v1798 = vadd.f32 %v1796, %v1797
  %v1799 = vrot.slane %v1798, 2
  %v1800 = vadd.f32 %v1798, %v1799
  %v1801 = vrot.slane %v1800, 1
  %v1802 = vadd.f32 %v1800, %v1801
  %v1803 = vsel %vm55, %v1699, 0.0
  %v1804 = vrot.slane %v1803, 4
  %v1805 = vadd.f32 %v1803, %v1804
  %v1806 = vrot.slane %v1805, 2
  %v1807 = vadd.f32 %v1805, %v1806
  %v1808 = vrot.slane %v1807, 1
  %v1809 = vadd.f32 %v1807, %v1808
  %v1810 = vsel %vm55, %v1700, 0.0
  %v1811 = vrot.slane %v1810, 4
  %v1812 = vadd.f32 %v1810, %v1811
  %v1813 = vrot.slane %v1812, 2
  %v1814 = vadd.f32 %v1812, %v1813
  %v1815 = vrot.slane %v1814, 1
  %v1816 = vadd.f32 %v1814, %v1815
  %v1817 = vsel %vm55, %v1701, 0.0
  %v1818 = vrot.slane %v1817, 4
  %v1819 = vadd.f32 %v1817, %v1818
  %v1820 = vrot.slane %v1819, 2
  %v1821 = vadd.f32 %v1819, %v1820
  %v1822 = vrot.slane %v1821, 1
  %v1823 = vadd.f32 %v1821, %v1822
  %v1824 = vsel %vm55, %v1702, 0.0
  %v1825 = vrot.slane %v1824, 4
  %v1826 = vadd.f32 %v1824, %v1825
  %v1827 = vrot.slane %v1826, 2
  %v1828 = vadd.f32 %v1826, %v1827
  %v1829 = vrot.slane %v1828, 1
  %v1830 = vadd.f32 %v1828, %v1829
  %v1831 = vsel %vm55, %v1703, 0.0
  %v1832 = vrot.slane %v1831, 4
  %v1833 = vadd.f32 %v1831, %v1832
  %v1834 = vrot.slane %v1833, 2
  %v1835 = vadd.f32 %v1833, %v1834
  %v1836 = vrot.slane %v1835, 1
  %v1837 = vadd.f32 %v1835, %v1836
  %v1838 = vsel %vm55, %v1704, 0.0
  %v1839 = vrot.slane %v1838, 4
  %v1840 = vadd.f32 %v1838, %v1839
  %v1841 = vrot.slane %v1840, 2
  %v1842 = vadd.f32 %v1840, %v1841
  %v1843 = vrot.slane %v1842, 1
  %v1844 = vadd.f32 %v1842, %v1843
  %v1845 = vsel %vm55, %v1705, 0.0
  %v1846 = vrot.slane %v1845, 4
  %v1847 = vadd.f32 %v1845, %v1846
  %v1848 = vrot.slane %v1847, 2
  %v1849 = vadd.f32 %v1847, %v1848
  %v1850 = vrot.slane %v1849, 1
  %v1851 = vadd.f32 %v1849, %v1850
  %v1852 = vsel %vm55, %v1706, 0.0
  %v1853 = vrot.slane %v1852, 4
  %v1854 = vadd.f32 %v1852, %v1853
  %v1855 = vrot.slane %v1854, 2
  %v1856 = vadd.f32 %v1854, %v1855
  %v1857 = vrot.slane %v1856, 1
  %v1858 = vadd.f32 %v1856, %v1857
  %v1859 = vsel %vm55, %v1707, 0.0
  %v1860 = vrot.slane %v1859, 4
  %v1861 = vadd.f32 %v1859, %v1860
  %v1862 = vrot.slane %v1861, 2
  %v1863 = vadd.f32 %v1861, %v1862
  %v1864 = vrot.slane %v1863, 1
  %v1865 = vadd.f32 %v1863, %v1864
  %v1866 = vsel %vm55, %v1708, 0.0
  %v1867 = vrot.slane %v1866, 4
  %v1868 = vadd.f32 %v1866, %v1867
  %v1869 = vrot.slane %v1868, 2
  %v1870 = vadd.f32 %v1868, %v1869
  %v1871 = vrot.slane %v1870, 1
  %v1872 = vadd.f32 %v1870, %v1871
  %v1873 = vsel %vm55, %v1709, 0.0
  %v1874 = vrot.slane %v1873, 4
  %v1875 = vadd.f32 %v1873, %v1874
  %v1876 = vrot.slane %v1875, 2
  %v1877 = vadd.f32 %v1875, %v1876
  %v1878 = vrot.slane %v1877, 1
  %v1879 = vadd.f32 %v1877, %v1878
  %v1880 = vsel %vm55, %v1710, 0.0
  %v1881 = vrot.slane %v1880, 4
  %v1882 = vadd.f32 %v1880, %v1881
  %v1883 = vrot.slane %v1882, 2
  %v1884 = vadd.f32 %v1882, %v1883
  %v1885 = vrot.slane %v1884, 1
  %v1886 = vadd.f32 %v1884, %v1885
  %v1887 = vsel %vm55, %v1711, 0.0
  %v1888 = vrot.slane %v1887, 4
  %v1889 = vadd.f32 %v1887, %v1888
  %v1890 = vrot.slane %v1889, 2
  %v1891 = vadd.f32 %v1889, %v1890
  %v1892 = vrot.slane %v1891, 1
  %v1893 = vadd.f32 %v1891, %v1892
  %v1894 = vsel %vm55, %v1712, 0.0
  %v1895 = vrot.slane %v1894, 4
  %v1896 = vadd.f32 %v1894, %v1895
  %v1897 = vrot.slane %v1896, 2
  %v1898 = vadd.f32 %v1896, %v1897
  %v1899 = vrot.slane %v1898, 1
  %v1900 = vadd.f32 %v1898, %v1899
  %v1901 = vsel %vm55, %v1713, 0.0
  %v1902 = vrot.slane %v1901, 4
  %v1903 = vadd.f32 %v1901, %v1902
  %v1904 = vrot.slane %v1903, 2
  %v1905 = vadd.f32 %v1903, %v1904
  %v1906 = vrot.slane %v1905, 1
  %v1907 = vadd.f32 %v1905, %v1906
  %v1908 = vsel %vm55, %v1714, 0.0
  %v1909 = vrot.slane %v1908, 4
  %v1910 = vadd.f32 %v1908, %v1909
  %v1911 = vrot.slane %v1910, 2
  %v1912 = vadd.f32 %v1910, %v1911
  %v1913 = vrot.slane %v1912, 1
  %v1914 = vadd.f32 %v1912, %v1913
  %v1915 = vsel %vm55, %v1715, 0.0
  %v1916 = vrot.slane %v1915, 4
  %v1917 = vadd.f32 %v1915, %v1916
  %v1918 = vrot.slane %v1917, 2
  %v1919 = vadd.f32 %v1917, %v1918
  %v1920 = vrot.slane %v1919, 1
  %v1921 = vadd.f32 %v1919, %v1920
  %v1922 = vsel %vm55, %v1716, 0.0
  %v1923 = vrot.slane %v1922, 4
  %v1924 = vadd.f32 %v1922, %v1923
  %v1925 = vrot.slane %v1924, 2
  %v1926 = vadd.f32 %v1924, %v1925
  %v1927 = vrot.slane %v1926, 1
  %v1928 = vadd.f32 %v1926, %v1927
  %v1929 = vsel %vm55, %v1717, 0.0
  %v1930 = vrot.slane %v1929, 4
  %v1931 = vadd.f32 %v1929, %v1930
  %v1932 = vrot.slane %v1931, 2
  %v1933 = vadd.f32 %v1931, %v1932
  %v1934 = vrot.slane %v1933, 1
  %v1935 = vadd.f32 %v1933, %v1934
  %v1936 = vsel %vm55, %v1718, 0.0
  %v1937 = vrot.slane %v1936, 4
  %v1938 = vadd.f32 %v1936, %v1937
  %v1939 = vrot.slane %v1938, 2
  %v1940 = vadd.f32 %v1938, %v1939
  %v1941 = vrot.slane %v1940, 1
  %v1942 = vadd.f32 %v1940, %v1941
  %v1975 = vsel %vm715, %v1732, %v1725
  %v1976 = vsel %vm717, %v1739, %v1975
  %v1977 = vsel %vm719, %v1746, %v1976
  %v1978 = vsel %vm721, %v1753, %v1977
  %v1979 = vsel %vm723, %v1760, %v1978
  %v1980 = vsel %vm725, %v1767, %v1979
  %v1981 = vsel %vm727, %v1774, %v1980
  %v1982 = vsel %vm715, %v1788, %v1781
  %v1983 = vsel %vm717, %v1795, %v1982
  %v1984 = vsel %vm719, %v1802, %v1983
  %v1985 = vsel %vm721, %v1809, %v1984
  %v1986 = vsel %vm723, %v1816, %v1985
  %v1987 = vsel %vm725, %v1823, %v1986
  %v1988 = vsel %vm727, %v1830, %v1987
  %v1989 = vsel %vm715, %v1844, %v1837
  %v1990 = vsel %vm717, %v1851, %v1989
  %v1991 = vsel %vm719, %v1858, %v1990
  %v1992 = vsel %vm721, %v1865, %v1991
  %v1993 = vsel %vm723, %v1872, %v1992
  %v1994 = vsel %vm725, %v1879, %v1993
  %v1995 = vsel %vm727, %v1886, %v1994
  %v1996 = vsel %vm715, %v1900, %v1893
  %v1997 = vsel %vm717, %v1907, %v1996
  %v1998 = vsel %vm719, %v1914, %v1997
  %v1999 = vsel %vm721, %v1921, %v1998
  %v2000 = vsel %vm723, %v1928, %v1999
  %v2001 = vsel %vm725, %v1935, %v2000
  %v2002 = vsel %vm727, %v1942, %v2001
  %v2007 = vsel %vm55, %v1981, 0.0
  %2008 = vadd.xlane.f32.xlu0 %v2007
  %v2009 = vpop.xlane.xlu0 %2008
  %v2010 = vsel %vm55, %v1988, 0.0
  %2011 = vadd.xlane.f32.xlu0 %v2010
  %v2012 = vpop.xlane.xlu0 %2011
  %v2013 = vsel %vm55, %v1995, 0.0
  %2014 = vadd.xlane.f32.xlu0 %v2013
  %v2015 = vpop.xlane.xlu0 %2014
  %v2016 = vsel %vm55, %v2002, 0.0
  %2017 = vadd.xlane.f32.xlu0 %v2016
  %v2018 = vpop.xlane.xlu0 %2017
  %v2019 = vrcp.pop 32.0
  %v2020 = vmul.f32 %v2009, %v2019
  %v2021 = vmul.f32 %v2012, %v2019
  %v2022 = vmul.f32 %v2015, %v2019
  %v2023 = vmul.f32 %v2018, %v2019
  %v2028 = vrot.slane %v2020, 1
  %v2029 = vrot.slane %v2020, 2
  %v2030 = vrot.slane %v2020, 3
  %v2031 = vrot.slane %v2020, 4
  %v2032 = vrot.slane %v2020, 5
  %v2033 = vrot.slane %v2020, 6
  %v2034 = vrot.slane %v2020, 7
  %v2035 = vrot.slane %v2021, 1
  %v2036 = vrot.slane %v2021, 2
  %v2037 = vrot.slane %v2021, 3
  %v2038 = vrot.slane %v2021, 4
  %v2039 = vrot.slane %v2021, 5
  %v2040 = vrot.slane %v2021, 6
  %v2041 = vrot.slane %v2021, 7
  %v2042 = vrot.slane %v2022, 1
  %v2043 = vrot.slane %v2022, 2
  %v2044 = vrot.slane %v2022, 3
  %v2045 = vrot.slane %v2022, 4
  %v2046 = vrot.slane %v2022, 5
  %v2047 = vrot.slane %v2022, 6
  %v2048 = vrot.slane %v2022, 7
  %v2049 = vrot.slane %v2023, 1
  %v2050 = vrot.slane %v2023, 2
  %v2051 = vrot.slane %v2023, 3
  %v2052 = vrot.slane %v2023, 4
  %v2053 = vrot.slane %v2023, 5
  %v2054 = vrot.slane %v2023, 6
  %v2055 = vrot.slane %v2023, 7
  %v2088 = vsub.f32 %v1725, %v2020
  %v2089 = vsub.f32 %v1732, %v2028
  %v2090 = vsub.f32 %v1739, %v2029
  %v2091 = vsub.f32 %v1746, %v2030
  %v2092 = vsub.f32 %v1753, %v2031
  %v2093 = vsub.f32 %v1760, %v2032
  %v2094 = vsub.f32 %v1767, %v2033
  %v2095 = vsub.f32 %v1774, %v2034
  %v2096 = vsub.f32 %v1781, %v2021
  %v2097 = vsub.f32 %v1788, %v2035
  %v2098 = vsub.f32 %v1795, %v2036
  %v2099 = vsub.f32 %v1802, %v2037
  %v2100 = vsub.f32 %v1809, %v2038
  %v2101 = vsub.f32 %v1816, %v2039
  %v2102 = vsub.f32 %v1823, %v2040
  %v2103 = vsub.f32 %v1830, %v2041
  %v2104 = vsub.f32 %v1837, %v2022
  %v2105 = vsub.f32 %v1844, %v2042
  %v2106 = vsub.f32 %v1851, %v2043
  %v2107 = vsub.f32 %v1858, %v2044
  %v2108 = vsub.f32 %v1865, %v2045
  %v2109 = vsub.f32 %v1872, %v2046
  %v2110 = vsub.f32 %v1879, %v2047
  %v2111 = vsub.f32 %v1886, %v2048
  %v2112 = vsub.f32 %v1893, %v2023
  %v2113 = vsub.f32 %v1900, %v2049
  %v2114 = vsub.f32 %v1907, %v2050
  %v2115 = vsub.f32 %v1914, %v2051
  %v2116 = vsub.f32 %v1921, %v2052
  %v2117 = vsub.f32 %v1928, %v2053
  %v2118 = vsub.f32 %v1935, %v2054
  %v2119 = vsub.f32 %v1942, %v2055
  %v2120 = vmul.f32 %v2088, %v2088
  %v2121 = vmul.f32 %v2089, %v2089
  %v2122 = vmul.f32 %v2090, %v2090
  %v2123 = vmul.f32 %v2091, %v2091
  %v2124 = vmul.f32 %v2092, %v2092
  %v2125 = vmul.f32 %v2093, %v2093
  %v2126 = vmul.f32 %v2094, %v2094
  %v2127 = vmul.f32 %v2095, %v2095
  %v2128 = vmul.f32 %v2096, %v2096
  %v2129 = vmul.f32 %v2097, %v2097
  %v2130 = vmul.f32 %v2098, %v2098
  %v2131 = vmul.f32 %v2099, %v2099
  %v2132 = vmul.f32 %v2100, %v2100
  %v2133 = vmul.f32 %v2101, %v2101
  %v2134 = vmul.f32 %v2102, %v2102
  %v2135 = vmul.f32 %v2103, %v2103
  %v2136 = vmul.f32 %v2104, %v2104
  %v2137 = vmul.f32 %v2105, %v2105
  %v2138 = vmul.f32 %v2106, %v2106
  %v2139 = vmul.f32 %v2107, %v2107
  %v2140 = vmul.f32 %v2108, %v2108
  %v2141 = vmul.f32 %v2109, %v2109
  %v2142 = vmul.f32 %v2110, %v2110
  %v2143 = vmul.f32 %v2111, %v2111
  %v2144 = vmul.f32 %v2112, %v2112
  %v2145 = vmul.f32 %v2113, %v2113
  %v2146 = vmul.f32 %v2114, %v2114
  %v2147 = vmul.f32 %v2115, %v2115
  %v2148 = vmul.f32 %v2116, %v2116
  %v2149 = vmul.f32 %v2117, %v2117
  %v2150 = vmul.f32 %v2118, %v2118
  %v2151 = vmul.f32 %v2119, %v2119
  %v2184 = vrot.slane %v2121, 7
  %v2185 = vsel %vm715, %v2184, %v2120
  %v2186 = vrot.slane %v2122, 6
  %v2187 = vsel %vm717, %v2186, %v2185
  %v2188 = vrot.slane %v2123, 5
  %v2189 = vsel %vm719, %v2188, %v2187
  %v2190 = vrot.slane %v2124, 4
  %v2191 = vsel %vm721, %v2190, %v2189
  %v2192 = vrot.slane %v2125, 3
  %v2193 = vsel %vm723, %v2192, %v2191
  %v2194 = vrot.slane %v2126, 2
  %v2195 = vsel %vm725, %v2194, %v2193
  %v2196 = vrot.slane %v2127, 1
  %v2197 = vsel %vm727, %v2196, %v2195
  %v2198 = vrot.slane %v2129, 7
  %v2199 = vsel %vm715, %v2198, %v2128
  %v2200 = vrot.slane %v2130, 6
  %v2201 = vsel %vm717, %v2200, %v2199
  %v2202 = vrot.slane %v2131, 5
  %v2203 = vsel %vm719, %v2202, %v2201
  %v2204 = vrot.slane %v2132, 4
  %v2205 = vsel %vm721, %v2204, %v2203
  %v2206 = vrot.slane %v2133, 3
  %v2207 = vsel %vm723, %v2206, %v2205
  %v2208 = vrot.slane %v2134, 2
  %v2209 = vsel %vm725, %v2208, %v2207
  %v2210 = vrot.slane %v2135, 1
  %v2211 = vsel %vm727, %v2210, %v2209
  %v2212 = vrot.slane %v2137, 7
  %v2213 = vsel %vm715, %v2212, %v2136
  %v2214 = vrot.slane %v2138, 6
  %v2215 = vsel %vm717, %v2214, %v2213
  %v2216 = vrot.slane %v2139, 5
  %v2217 = vsel %vm719, %v2216, %v2215
  %v2218 = vrot.slane %v2140, 4
  %v2219 = vsel %vm721, %v2218, %v2217
  %v2220 = vrot.slane %v2141, 3
  %v2221 = vsel %vm723, %v2220, %v2219
  %v2222 = vrot.slane %v2142, 2
  %v2223 = vsel %vm725, %v2222, %v2221
  %v2224 = vrot.slane %v2143, 1
  %v2225 = vsel %vm727, %v2224, %v2223
  %v2226 = vrot.slane %v2145, 7
  %v2227 = vsel %vm715, %v2226, %v2144
  %v2228 = vrot.slane %v2146, 6
  %v2229 = vsel %vm717, %v2228, %v2227
  %v2230 = vrot.slane %v2147, 5
  %v2231 = vsel %vm719, %v2230, %v2229
  %v2232 = vrot.slane %v2148, 4
  %v2233 = vsel %vm721, %v2232, %v2231
  %v2234 = vrot.slane %v2149, 3
  %v2235 = vsel %vm723, %v2234, %v2233
  %v2236 = vrot.slane %v2150, 2
  %v2237 = vsel %vm725, %v2236, %v2235
  %v2238 = vrot.slane %v2151, 1
  %v2239 = vsel %vm727, %v2238, %v2237
  %v2244 = vsel %vm55, %v2197, 0.0
  %2245 = vadd.xlane.f32.xlu0 %v2244
  %v2246 = vpop.xlane.xlu0 %2245
  %v2247 = vsel %vm55, %v2211, 0.0
  %2248 = vadd.xlane.f32.xlu0 %v2247
  %v2249 = vpop.xlane.xlu0 %2248
  %v2250 = vsel %vm55, %v2225, 0.0
  %2251 = vadd.xlane.f32.xlu0 %v2250
  %v2252 = vpop.xlane.xlu0 %2251
  %v2253 = vsel %vm55, %v2239, 0.0
  %2254 = vadd.xlane.f32.xlu0 %v2253
  %v2255 = vpop.xlane.xlu0 %2254
  %v2256 = vmul.f32 %v2246, %v2019
  %v2257 = vmul.f32 %v2249, %v2019
  %v2258 = vmul.f32 %v2252, %v2019
  %v2259 = vmul.f32 %v2255, %v2019
  %v2260 = vadd.f32 %v2256, 1e-12
  %v2261 = vadd.f32 %v2257, 1e-12
  %v2262 = vadd.f32 %v2258, 1e-12
  %v2263 = vadd.f32 %v2259, 1e-12
  %v2264 = vrsqrt.pop %v2260
  %v2265 = vrsqrt.pop %v2261
  %v2266 = vrsqrt.pop %v2262
  %v2267 = vrsqrt.pop %v2263
  %v2272 = vrot.slane %v2264, 1
  %v2273 = vrot.slane %v2264, 2
  %v2274 = vrot.slane %v2264, 3
  %v2275 = vrot.slane %v2264, 4
  %v2276 = vrot.slane %v2264, 5
  %v2277 = vrot.slane %v2264, 6
  %v2278 = vrot.slane %v2264, 7
  %v2279 = vrot.slane %v2265, 1
  %v2280 = vrot.slane %v2265, 2
  %v2281 = vrot.slane %v2265, 3
  %v2282 = vrot.slane %v2265, 4
  %v2283 = vrot.slane %v2265, 5
  %v2284 = vrot.slane %v2265, 6
  %v2285 = vrot.slane %v2265, 7
  %v2286 = vrot.slane %v2266, 1
  %v2287 = vrot.slane %v2266, 2
  %v2288 = vrot.slane %v2266, 3
  %v2289 = vrot.slane %v2266, 4
  %v2290 = vrot.slane %v2266, 5
  %v2291 = vrot.slane %v2266, 6
  %v2292 = vrot.slane %v2266, 7
  %v2293 = vrot.slane %v2267, 1
  %v2294 = vrot.slane %v2267, 2
  %v2295 = vrot.slane %v2267, 3
  %v2296 = vrot.slane %v2267, 4
  %v2297 = vrot.slane %v2267, 5
  %v2298 = vrot.slane %v2267, 6
  %v2299 = vrot.slane %v2267, 7
  %v2332 = vmul.f32 %v2088, %v2264
  %v2333 = vmul.f32 %v2089, %v2272
  %v2334 = vmul.f32 %v2090, %v2273
  %v2335 = vmul.f32 %v2091, %v2274
  %v2336 = vmul.f32 %v2092, %v2275
  %v2337 = vmul.f32 %v2093, %v2276
  %v2338 = vmul.f32 %v2094, %v2277
  %v2339 = vmul.f32 %v2095, %v2278
  %v2340 = vmul.f32 %v2096, %v2265
  %v2341 = vmul.f32 %v2097, %v2279
  %v2342 = vmul.f32 %v2098, %v2280
  %v2343 = vmul.f32 %v2099, %v2281
  %v2344 = vmul.f32 %v2100, %v2282
  %v2345 = vmul.f32 %v2101, %v2283
  %v2346 = vmul.f32 %v2102, %v2284
  %v2347 = vmul.f32 %v2103, %v2285
  %v2348 = vmul.f32 %v2104, %v2266
  %v2349 = vmul.f32 %v2105, %v2286
  %v2350 = vmul.f32 %v2106, %v2287
  %v2351 = vmul.f32 %v2107, %v2288
  %v2352 = vmul.f32 %v2108, %v2289
  %v2353 = vmul.f32 %v2109, %v2290
  %v2354 = vmul.f32 %v2110, %v2291
  %v2355 = vmul.f32 %v2111, %v2292
  %v2356 = vmul.f32 %v2112, %v2267
  %v2357 = vmul.f32 %v2113, %v2293
  %v2358 = vmul.f32 %v2114, %v2294
  %v2359 = vmul.f32 %v2115, %v2295
  %v2360 = vmul.f32 %v2116, %v2296
  %v2361 = vmul.f32 %v2117, %v2297
  %v2362 = vmul.f32 %v2118, %v2298
  %v2363 = vmul.f32 %v2119, %v2299
  %v2364 = vlaneseq
  %v2365 = vshrl.u32 %v2364, 7
  %v2366 = vsub.s32 2, %v2365
  %v2367 = vrot.slane %v46, %v2366
  %v2400 = vrot.slane %v2333, 7
  %v2401 = vsel %vm715, %v2400, %v2332
  %v2402 = vrot.slane %v2334, 6
  %v2403 = vsel %vm717, %v2402, %v2401
  %v2404 = vrot.slane %v2335, 5
  %v2405 = vsel %vm719, %v2404, %v2403
  %v2406 = vrot.slane %v2336, 4
  %v2407 = vsel %vm721, %v2406, %v2405
  %v2408 = vrot.slane %v2337, 3
  %v2409 = vsel %vm723, %v2408, %v2407
  %v2410 = vrot.slane %v2338, 2
  %v2411 = vsel %vm725, %v2410, %v2409
  %v2412 = vrot.slane %v2339, 1
  %v2413 = vsel %vm727, %v2412, %v2411
  %v2414 = vrot.slane %v2341, 7
  %v2415 = vsel %vm715, %v2414, %v2340
  %v2416 = vrot.slane %v2342, 6
  %v2417 = vsel %vm717, %v2416, %v2415
  %v2418 = vrot.slane %v2343, 5
  %v2419 = vsel %vm719, %v2418, %v2417
  %v2420 = vrot.slane %v2344, 4
  %v2421 = vsel %vm721, %v2420, %v2419
  %v2422 = vrot.slane %v2345, 3
  %v2423 = vsel %vm723, %v2422, %v2421
  %v2424 = vrot.slane %v2346, 2
  %v2425 = vsel %vm725, %v2424, %v2423
  %v2426 = vrot.slane %v2347, 1
  %v2427 = vsel %vm727, %v2426, %v2425
  %v2428 = vrot.slane %v2349, 7
  %v2429 = vsel %vm715, %v2428, %v2348
  %v2430 = vrot.slane %v2350, 6
  %v2431 = vsel %vm717, %v2430, %v2429
  %v2432 = vrot.slane %v2351, 5
  %v2433 = vsel %vm719, %v2432, %v2431
  %v2434 = vrot.slane %v2352, 4
  %v2435 = vsel %vm721, %v2434, %v2433
  %v2436 = vrot.slane %v2353, 3
  %v2437 = vsel %vm723, %v2436, %v2435
  %v2438 = vrot.slane %v2354, 2
  %v2439 = vsel %vm725, %v2438, %v2437
  %v2440 = vrot.slane %v2355, 1
  %v2441 = vsel %vm727, %v2440, %v2439
  %v2442 = vrot.slane %v2357, 7
  %v2443 = vsel %vm715, %v2442, %v2356
  %v2444 = vrot.slane %v2358, 6
  %v2445 = vsel %vm717, %v2444, %v2443
  %v2446 = vrot.slane %v2359, 5
  %v2447 = vsel %vm719, %v2446, %v2445
  %v2448 = vrot.slane %v2360, 4
  %v2449 = vsel %vm721, %v2448, %v2447
  %v2450 = vrot.slane %v2361, 3
  %v2451 = vsel %vm723, %v2450, %v2449
  %v2452 = vrot.slane %v2362, 2
  %v2453 = vsel %vm725, %v2452, %v2451
  %v2454 = vrot.slane %v2363, 1
  %v2455 = vsel %vm727, %v2454, %v2453
  %v2460 = vmul.f32 %v2367, %v2413
  %v2461 = vmul.f32 %v2367, %v2427
  %v2462 = vmul.f32 %v2367, %v2441
  %v2463 = vmul.f32 %v2367, %v2455
  %v2464 = vlaneseq
  %v2465 = vshrl.u32 %v2464, 7
  %v2466 = vsub.s32 3, %v2465
  %v2467 = vrot.slane %v46, %v2466
  %v2468 = vadd.f32 %v2460, %v2467
  %v2469 = vadd.f32 %v2461, %v2467
  %v2470 = vadd.f32 %v2462, %v2467
  %v2471 = vadd.f32 %v2463, %v2467
  %2472 = vst.msk [vmem:[%s3] sm:$0xff] %vm55, %v2468
  %2473 = vst.msk [vmem:[%s3 + $0x8] sm:$0xff] %vm55, %v2469
  %2474 = vst.msk [vmem:[%s3 + $0x10] sm:$0xff] %vm55, %v2470
  %2475 = vst.msk [vmem:[%s3 + $0x18] sm:$0xff] %vm55, %v2471
  // Predicated region
  $region14: #{self_attention_embed.1} parent=0 // pred_check
    _
  $region15: #{self_attention_embed.1} parent=0 // pred_check_branch
    %2477 = sbr.rel (0) target = $region17
  $region16: #{self_attention_embed.1} parent=0 // pred_region
    _
  $region17: #{self_attention_embed.1} parent=0 // pred_fallthru
    _
  // Predicated region
  $region18: #{self_attention_embed.1} parent=0 // pred_check
    _
  $region19: #{self_attention_embed.1} parent=0 // pred_check_branch
    %2479 = sbr.rel (0) target = $region21
  $region20: #{self_attention_embed.1} parent=0 // pred_region
    _
  $region21: #{self_attention_embed.1} parent=0 // pred_fallthru
    _

</llo_original>
